<compile_context>
chip_gen: v5e
topology: v5e:2x2
jax: 0.10.0
libtpu: 0.0.40
codegen_flags: <defaults>
</compile_context>

<pallas_src>
import numpy as np
import jax
import jax.numpy as jnp
from jax.experimental import pallas as pl
from jax.experimental.pallas import tpu as pltpu

# ---- problem configuration (small synthetic shapes) -------------------------
N, C_IN, C_OUT, H, W = 2, 4, 32, 16, 16     # GroupNorm(32, C_OUT) needs C_OUT % 32 == 0
GROUPS = 32
EPS = 1e-5
KH = KW = 3
HW = H * W
OH, OW = 2 * H, 2 * W
OHW = OH * OW

# This kernel exploits the exact conv-bias cancellation, which only holds when every
# GroupNorm group has a single channel (cpg == 1), as in this module config.
# TODO(synk): cpg > 1 (C_OUT > 32) needs the conv bias back plus a reduce-then-combine
#             group-stat path (per-channel sums combined per group; no in-kernel reshape).
assert C_OUT == GROUPS, "kernel specialised to GroupNorm with one channel per group"

# Matmul-operand dtype (see header note): f32 keeps the 2e-3 check safe; bf16 halves the
# U^T DMA bytes and MXU passes on v5e/v6e/v7x if the tolerance allows.
MATMUL_DTYPE = jnp.float32


def _interp_matrix(in_size, out_size):
    """Row i gives the bilinear (align_corners=True) weights over the input axis."""
    idx = np.arange(out_size, dtype=np.float64)
    if out_size == 1:
        src = np.zeros_like(idx)
    else:
        src = idx * (in_size - 1) / (out_size - 1)
    lo = np.clip(np.floor(src).astype(np.int64), 0, max(in_size - 2, 0))
    frac = src - lo
    A = np.zeros((out_size, in_size), dtype=np.float32)
    A[np.arange(out_size), lo] += (1.0 - frac)
    A[np.arange(out_size), np.minimum(lo + 1, in_size - 1)] += frac
    return A


def upsample_block_kernel(p_ref, w_ref, gb_ref, ut_ref, out_ref):
    # layout: p_ref  (N, 9*Cin, H*W)   channel-first im2col patches (lane-dense)
    #         w_ref  (Cout, 9*Cin)     flattened conv weights (no bias -- cancelled by GN)
    #         gb_ref (Cout, 2)         [gamma | beta]
    #         ut_ref (H*W, 4*H*W)      transposed kron(Ah, Aw) bilinear matrix
    #         out_ref (N*Cout, 4*H*W)  lane-dense; reshapes row-major to NCHW for free
    gb = gb_ref[...]
    gamma = gb[:, 0:1]                                             # (Cout, 1)
    beta = gb[:, 1:2]                                              # (Cout, 1)
    w = w_ref[...]

    n = p_ref.shape[0]                                             # static batch size
    ys = []
    for i in range(n):                                             # static unroll (N=2)
        # --- 3x3 conv as one fused MXU matmul (K = 9*Cin = 36) ---
        acc = jnp.dot(w, p_ref[i], preferred_element_type=jnp.float32)   # (Cout, HW) f32
        # --- GroupNorm (GROUPS == Cout -> per-channel stats over HW), centered two-pass
        #     variance; conv bias omitted (exactly cancelled by the mean subtraction);
        #     normalization + affine folded into ONE FMA, fused with the ReLU ---
        mean = jnp.mean(acc, axis=1, keepdims=True)                # (Cout, 1)
        xc = acc - mean
        var = jnp.mean(xc * xc, axis=1, keepdims=True)             # (Cout, 1)
        scale = gamma * jax.lax.rsqrt(var + EPS)
        shift = beta - mean * scale
        ys.append(jnp.maximum(acc * scale + shift, 0.0))           # (Cout, HW)

    # stack both samples along the sublane (M) axis -> one big MXU matmul (M = N*Cout).
    y = ys[0] if n == 1 else jnp.concatenate(ys, axis=0)           # (N*Cout, HW)

    # --- bilinear 2x upsample (align_corners=True) as ONE lane-dense MXU matmul ---
    # TODO(synk): switch to the separable Ah/Aw two-matmul form before scaling H, W
    #             (dense kron is 16*(H*W)^2 bytes f32 -> 16 MiB at 32x32, critical on
    #             v7x's 64 MiB VMEM, and >=98% zeros / wasted FLOPs).
    out_ref[...] = jnp.dot(y.astype(ut_ref.dtype), ut_ref[...],
                           preferred_element_type=jnp.float32)     # (N*Cout, 4*HW)


def prepare_upsample_block_params(conv_w, gamma, beta):
    """One-time (per-model) parameter preprocessing, hoisted out of the per-call path.

    The conv bias is intentionally NOT consumed: with GROUPS == C_OUT the GroupNorm
    mean subtraction cancels it exactly, so it never reaches the kernel.
    """
    # conv weights (Cout, Cin, 3, 3) -> (Cout, 9*Cin), tap-major to match the patches.
    w_flat = jnp.transpose(conv_w, (0, 2, 3, 1)).reshape(
        C_OUT, KH * KW * C_IN).astype(MATMUL_DTYPE)
    # merged per-channel affine params: one (Cout, 2) operand instead of two (Cout, 1).
    gb = jnp.stack([gamma, beta], axis=1).astype(jnp.float32)      # (Cout, 2)
    # dense bilinear 2x matrix U^T = kron(Ah, Aw)^T  (grid-free: loaded exactly once).
    ah = _interp_matrix(H, OH)
    aw = _interp_matrix(W, OW)
    ut = jnp.asarray(np.ascontiguousarray(np.kron(ah, aw).T)).astype(MATMUL_DTYPE)
    return w_flat, gb, ut


def upsample_block(x_nchw, w_flat, gb, ut):
    """Per-call forward: im2col (x-dependent) + one pallas_call invocation."""
    n = x_nchw.shape[0]
    # zero-pad spatial dims by 1 (conv padding=1); stay channel-first.
    xpad = jnp.pad(x_nchw.astype(jnp.float32), ((0, 0), (0, 0), (1, 1), (1, 1)))
    # im2col glue, channel-first & lane-dense: (N, 9*Cin, H*W), K-order = (tap, cin).
    # TODO(synk): move im2col into the kernel (DMA the padded NCHW tile and build the 9
    #             taps from VMEM) to avoid the 9x HBM patch expansion once H, W grow.
    patches = jnp.stack(
        [xpad[:, :, kh:kh + H, kw:kw + W].reshape(n, C_IN, HW)
         for kh in range(KH) for kw in range(KW)], axis=1)         # (N, 9, Cin, HW)
    patches = patches.reshape(n, KH * KW * C_IN, HW).astype(MATMUL_DTYPE)

    out = pl.pallas_call(
        upsample_block_kernel,
        out_shape=jax.ShapeDtypeStruct((n * C_OUT, OHW), jnp.float32),
        # No grid: a single invocation with every operand fully VMEM-resident.  There is
        # nothing to pipeline, so no double-buffers are allocated and no per-grid-step
        # overhead is paid (the dominant cost at these shapes on single-TC v5e/v6e), and
        # only one copy of U^T lives in VMEM.
        in_specs=[pl.BlockSpec(memory_space=pltpu.MemorySpace.VMEM)] * 4,
        out_specs=pl.BlockSpec(memory_space=pltpu.MemorySpace.VMEM),
    )(patches, w_flat, gb, ut)

    # (N*C, 2H*2W) reshapes row-major directly to NCHW -- no transpose needed.
    return out.reshape(n, C_OUT, OH, OW)


def reference(x_nchw, conv_w, conv_b, gamma, beta):
    """Pure-JAX reference matching the PyTorch module semantics (uses the conv bias)."""
    y = jax.lax.conv_general_dilated(
        x_nchw, conv_w, window_strides=(1, 1), padding=((1, 1), (1, 1)),
        dimension_numbers=('NCHW', 'OIHW', 'NCHW'))
    y = y + conv_b[None, :, None, None]
    n, c, h, w = y.shape
    yg = y.reshape(n, GROUPS, c // GROUPS, h, w)
    mean = yg.mean(axis=(2, 3, 4), keepdims=True)
    var = ((yg - mean) ** 2).mean(axis=(2, 3, 4), keepdims=True)
    yn = (yg - mean) / jnp.sqrt(var + EPS)
    yn = yn.reshape(n, c, h, w) * gamma[None, :, None, None] + beta[None, :, None, None]
    yn = jnp.maximum(yn, 0.0)
    ah = jnp.asarray(_interp_matrix(h, 2 * h))
    aw = jnp.asarray(_interp_matrix(w, 2 * w))
    return jnp.einsum('ih,nchw,jw->ncij', ah, yn, aw)


if __name__ == "__main__":
    key = jax.random.PRNGKey(0)
    k1, k2, k3, k4, k5 = jax.random.split(key, 5)
    x = jax.random.normal(k1, (N, C_IN, H, W), jnp.float32)
    # deterministic xavier-uniform-ish init for the conv weight (dim > 1)
    limit = float(np.sqrt(6.0 / (C_IN * KH * KW + C_OUT * KH * KW)))
    conv_w = jax.random.uniform(k2, (C_OUT, C_IN, KH, KW), jnp.float32, -limit, limit)
    conv_b = 0.1 * jax.random.normal(k3, (C_OUT,), jnp.float32)
    gamma = 1.0 + 0.1 * jax.random.normal(k4, (C_OUT,), jnp.float32)
    beta = 0.1 * jax.random.normal(k5, (C_OUT,), jnp.float32)

    # one-time parameter prep (hoisted); only im2col + the kernel run per call.
    w_flat, gb, ut = prepare_upsample_block_params(conv_w, gamma, beta)
    fwd = jax.jit(upsample_block)

    out = jax.block_until_ready(fwd(x, w_flat, gb, ut))

    ref = jax.block_until_ready(reference(x, conv_w, conv_b, gamma, beta))
    np.testing.assert_allclose(np.asarray(out), np.asarray(ref), rtol=2e-3, atol=2e-3)

    print("KERNEL_OK")
</pallas_src>

<mosaic_0001>
module attributes {stable_mosaic.version = 11 : i64} {
  func.func @upsample_block_kernel(%arg0: memref<2x36x256xf32, #tpu.memory_space<vmem>>, %arg1: memref<32x36xf32, #tpu.memory_space<vmem>>, %arg2: memref<32x2xf32, #tpu.memory_space<vmem>>, %arg3: memref<256x1024xf32, #tpu.memory_space<vmem>>, %arg4: memref<64x1024xf32, #tpu.memory_space<vmem>>) attributes {dimension_semantics = [], scalar_prefetch = 0 : i64, scratch_operands = 0 : i64, tpu.core_type = #tpu.core_type<tc>} {
    %c0 = arith.constant 0 : index
    %c0_0 = arith.constant 0 : index
    %0 = vector.load %arg2[%c0, %c0_0] : memref<32x2xf32, #tpu.memory_space<vmem>>, vector<32x2xf32>
    %1 = vector.extract_strided_slice %0 {offsets = [0, 0], sizes = [32, 1], strides = [1, 1]} : vector<32x2xf32> to vector<32x1xf32>
    %2 = vector.extract_strided_slice %0 {offsets = [0, 1], sizes = [32, 1], strides = [1, 1]} : vector<32x2xf32> to vector<32x1xf32>
    %c0_1 = arith.constant 0 : index
    %c0_2 = arith.constant 0 : index
    %3 = vector.load %arg1[%c0_1, %c0_2] : memref<32x36xf32, #tpu.memory_space<vmem>>, vector<32x36xf32>
    %c0_3 = arith.constant 0 : index
    %c0_4 = arith.constant 0 : index
    %c0_5 = arith.constant 0 : index
    %4 = vector.load %arg0[%c0_3, %c0_4, %c0_5] : memref<2x36x256xf32, #tpu.memory_space<vmem>>, vector<1x36x256xf32>
    %5 = vector.shape_cast %4 : vector<1x36x256xf32> to vector<36x256xf32>
    %cst = arith.constant dense<0.000000e+00> : vector<32x256xf32>
    %6 = tpu.matmul %3, %5, %cst {dimension_numbers = #tpu.dot_dimension_numbers<[1], [0], [0], [1], [0, 0, 1, 1], [], []>} : vector<32x36xf32>, vector<36x256xf32>, vector<32x256xf32> -> vector<32x256xf32>
    %cst_6 = arith.constant dense<0.000000e+00> : vector<32xf32>
    %7 = vector.multi_reduction <add>, %6, %cst_6 [1] : vector<32x256xf32> to vector<32xf32>
    %8 = vector.shape_cast %7 : vector<32xf32> to vector<32x1xf32>
    %cst_7 = arith.constant 2.560000e+02 : f32
    %9 = vector.broadcast %cst_7 : f32 to vector<32x1xf32>
    %10 = arith.divf %8, %9 : vector<32x1xf32>
    %11 = vector.broadcast %10 : vector<32x1xf32> to vector<32x256xf32>
    %12 = arith.subf %6, %11 : vector<32x256xf32>
    %13 = arith.mulf %12, %12 : vector<32x256xf32>
    %cst_8 = arith.constant dense<0.000000e+00> : vector<32xf32>
    %14 = vector.multi_reduction <add>, %13, %cst_8 [1] : vector<32x256xf32> to vector<32xf32>
    %15 = vector.shape_cast %14 : vector<32xf32> to vector<32x1xf32>
    %cst_9 = arith.constant 2.560000e+02 : f32
    %16 = vector.broadcast %cst_9 : f32 to vector<32x1xf32>
    %17 = arith.divf %15, %16 : vector<32x1xf32>
    %cst_10 = arith.constant 9.99999974E-6 : f32
    %18 = vector.broadcast %cst_10 : f32 to vector<32x1xf32>
    %19 = arith.addf %17, %18 : vector<32x1xf32>
    %20 = math.rsqrt %19 : vector<32x1xf32>
    %21 = arith.mulf %1, %20 : vector<32x1xf32>
    %22 = arith.mulf %10, %21 : vector<32x1xf32>
    %23 = arith.subf %2, %22 : vector<32x1xf32>
    %24 = vector.broadcast %21 : vector<32x1xf32> to vector<32x256xf32>
    %25 = arith.mulf %6, %24 : vector<32x256xf32>
    %26 = vector.broadcast %23 : vector<32x1xf32> to vector<32x256xf32>
    %27 = arith.addf %25, %26 : vector<32x256xf32>
    %cst_11 = arith.constant 0.000000e+00 : f32
    %28 = vector.broadcast %cst_11 : f32 to vector<32x256xf32>
    %29 = arith.maximumf %27, %28 : vector<32x256xf32>
    %c1 = arith.constant 1 : index
    %c0_12 = arith.constant 0 : index
    %c0_13 = arith.constant 0 : index
    %30 = vector.load %arg0[%c1, %c0_12, %c0_13] : memref<2x36x256xf32, #tpu.memory_space<vmem>>, vector<1x36x256xf32>
    %31 = vector.shape_cast %30 : vector<1x36x256xf32> to vector<36x256xf32>
    %cst_14 = arith.constant dense<0.000000e+00> : vector<32x256xf32>
    %32 = tpu.matmul %3, %31, %cst_14 {dimension_numbers = #tpu.dot_dimension_numbers<[1], [0], [0], [1], [0, 0, 1, 1], [], []>} : vector<32x36xf32>, vector<36x256xf32>, vector<32x256xf32> -> vector<32x256xf32>
    %cst_15 = arith.constant dense<0.000000e+00> : vector<32xf32>
    %33 = vector.multi_reduction <add>, %32, %cst_15 [1] : vector<32x256xf32> to vector<32xf32>
    %34 = vector.shape_cast %33 : vector<32xf32> to vector<32x1xf32>
    %cst_16 = arith.constant 2.560000e+02 : f32
    %35 = vector.broadcast %cst_16 : f32 to vector<32x1xf32>
    %36 = arith.divf %34, %35 : vector<32x1xf32>
    %37 = vector.broadcast %36 : vector<32x1xf32> to vector<32x256xf32>
    %38 = arith.subf %32, %37 : vector<32x256xf32>
    %39 = arith.mulf %38, %38 : vector<32x256xf32>
    %cst_17 = arith.constant dense<0.000000e+00> : vector<32xf32>
    %40 = vector.multi_reduction <add>, %39, %cst_17 [1] : vector<32x256xf32> to vector<32xf32>
    %41 = vector.shape_cast %40 : vector<32xf32> to vector<32x1xf32>
    %cst_18 = arith.constant 2.560000e+02 : f32
    %42 = vector.broadcast %cst_18 : f32 to vector<32x1xf32>
    %43 = arith.divf %41, %42 : vector<32x1xf32>
    %cst_19 = arith.constant 9.99999974E-6 : f32
    %44 = vector.broadcast %cst_19 : f32 to vector<32x1xf32>
    %45 = arith.addf %43, %44 : vector<32x1xf32>
    %46 = math.rsqrt %45 : vector<32x1xf32>
    %47 = arith.mulf %1, %46 : vector<32x1xf32>
    %48 = arith.mulf %36, %47 : vector<32x1xf32>
    %49 = arith.subf %2, %48 : vector<32x1xf32>
    %50 = vector.broadcast %47 : vector<32x1xf32> to vector<32x256xf32>
    %51 = arith.mulf %32, %50 : vector<32x256xf32>
    %52 = vector.broadcast %49 : vector<32x1xf32> to vector<32x256xf32>
    %53 = arith.addf %51, %52 : vector<32x256xf32>
    %cst_20 = arith.constant 0.000000e+00 : f32
    %54 = vector.broadcast %cst_20 : f32 to vector<32x256xf32>
    %55 = arith.maximumf %53, %54 : vector<32x256xf32>
    %56 = tpu.concatenate %29, %55 in 0 : vector<32x256xf32>, vector<32x256xf32> -> vector<64x256xf32>
    %c0_21 = arith.constant 0 : index
    %c0_22 = arith.constant 0 : index
    %57 = vector.load %arg3[%c0_21, %c0_22] : memref<256x1024xf32, #tpu.memory_space<vmem>>, vector<256x1024xf32>
    %cst_23 = arith.constant dense<0.000000e+00> : vector<64x1024xf32>
    %58 = tpu.matmul %56, %57, %cst_23 {dimension_numbers = #tpu.dot_dimension_numbers<[1], [0], [0], [1], [0, 0, 1, 1], [], []>} : vector<64x256xf32>, vector<256x1024xf32>, vector<64x1024xf32> -> vector<64x1024xf32>
    %c0_24 = arith.constant 0 : index
    %c0_25 = arith.constant 0 : index
    %59 = vector.load %arg4[%c0_24, %c0_25] : memref<64x1024xf32, #tpu.memory_space<vmem>>, vector<64x1024xf32>
    tpu.vector_store %arg4[%c0_24, %c0_25], %58 {strides = array<i32>} : memref<64x1024xf32, #tpu.memory_space<vmem>>, vector<64x1024xf32>,
    return
  }
}

</mosaic_0001>

<llo_original>
// kernel: upsample_block.1
$region0: #{upsample_block.1}
  #allocation0 [shape = 'u32[]', space=smem, size = 0x4, offset = 0x4, fixed_abs, tag = 'smem constant byte address 0x4 - core index']
  #allocation1 [shape = 'u32[72,128]{1,0:T(1,128)}', space=vmem, size = 0x9000, scoped, tag = 'internal scratch']
  %s0 = inlined_call_operand.vmem [shape: f32[2,36,256], index: 0, kind: input, shape index: {}]
  %s1 = inlined_call_operand.vmem [shape: f32[32,36], index: 1, kind: input, shape index: {}]
  %s2 = inlined_call_operand.vmem [shape: f32[32,2], index: 2, kind: input, shape index: {}]
  %s3 = inlined_call_operand.vmem [shape: f32[256,1024], index: 3, kind: input, shape index: {}]
  %s4 = inlined_call_operand.vmem [shape: f32[64,1024], index: 4, kind: output, shape index: {}]
  %s5 = sld [smem:[#allocation0]]
  $region26: #{upsample_block.1} parent=0
    _
  %s7 = ssub.s32 1, %s5
  %s8 = scalar_select 0, %s7, %s5
  // Predicated region
  $region2: #{upsample_block.1} parent=0 // pred_check
    _
  $region3: #{upsample_block.1} parent=0 // pred_check_branch
    %10 = sbr.rel (0) target = $region5
  $region4: #{upsample_block.1} parent=0 // pred_region
    _
  $region5: #{upsample_block.1} parent=0 // pred_fallthru
    _
  // Predicated region
  $region6: #{upsample_block.1} parent=0 // pred_check
    _
  $region7: #{upsample_block.1} parent=0 // pred_check_branch
    %12 = sbr.rel (0) target = $region9
  $region8: #{upsample_block.1} parent=0 // pred_region
    _
  $region9: #{upsample_block.1} parent=0 // pred_fallthru
    _
  // Predicated region
  $region10: #{upsample_block.1} parent=0 // pred_check
    _
  $region11: #{upsample_block.1} parent=0 // pred_check_branch
    %14 = sbr.rel (0) target = $region13
  $region12: #{upsample_block.1} parent=0 // pred_region
    _
  $region13: #{upsample_block.1} parent=0 // pred_fallthru
    _
  // Predicated region
  $region14: #{upsample_block.1} parent=0 // pred_check
    _
  $region15: #{upsample_block.1} parent=0 // pred_check_branch
    %16 = sbr.rel (0) target = $region17
  $region16: #{upsample_block.1} parent=0 // pred_region
    _
  $region17: #{upsample_block.1} parent=0 // pred_fallthru
    _
  %v17 = vld [vmem:[%s2] sm:$0xff]
  %v18 = vld [vmem:[%s2 + $0x8] sm:$0xff]
  %v19 = vld [vmem:[%s2 + $0x10] sm:$0xff]
  %v20 = vld [vmem:[%s2 + $0x18] sm:$0xff]
  %v21 = vld [vmem:[%s1] sm:$0xff]
  %v22 = vld [vmem:[%s1 + $0x8] sm:$0xff]
  %v23 = vld [vmem:[%s1 + $0x10] sm:$0xff]
  %v24 = vld [vmem:[%s1 + $0x18] sm:$0xff]
  %v25 = vld [vmem:[%s0] sm:$0xff]
  %v26 = vld [vmem:[%s0 + $0x8] sm:$0xff]
  %v27 = vld [vmem:[%s0 + $0x10] sm:$0xff]
  %v28 = vld [vmem:[%s0 + $0x18] sm:$0xff]
  %v29 = vld [vmem:[%s0 + $0x20] sm:$0xff]
  %v30 = vld [vmem:[%s0 + $0x28] sm:$0xff]
  %v31 = vld [vmem:[%s0 + $0x30] sm:$0xff]
  %v32 = vld [vmem:[%s0 + $0x38] sm:$0xff]
  %v33 = vld [vmem:[%s0 + $0x40] sm:$0xf]
  %v34 = vld [vmem:[%s0 + $0x48] sm:$0xf]
  %vm35 = vcmask 293888
  %v37 = vsel %vm35, %v21, 0
  %v40 = vsel %vm35, %v22, 0
  %v43 = vsel %vm35, %v23, 0
  %v46 = vsel %vm35, %v24, 0
  %vm48 = vcmask 1043456
  %v50 = vsel %vm48, %v33, 0
  %v53 = vsel %vm48, %v34, 0
  %55 = vmatpush.msra.mxu0 0.0
  %56 = vmatpush.msra.mxu0 0.0
  %57 = vmatpush.msra.mxu0 0.0
  %58 = vmatpush.msra.mxu0 0.0
  %59 = vmatpush.msra.mxu0 0.0
  %60 = vmatpush.msra.mxu0 0.0
  %61 = vmatpush.msra.mxu0 0.0
  %62 = vmatpush.msra.mxu0 0.0
  %63 = vmatpush.msra.mxu0 0.0
  %64 = vmatpush.msra.mxu0 0.0
  %65 = vmatpush.msra.mxu0 0.0
  %66 = vmatpush.msra.mxu0 %v50
  %67 = vmatpush.msra.mxu0 %v31
  %68 = vmatpush.msra.mxu0 %v29
  %69 = vmatpush.msra.mxu0 %v27
  %70 = vmatpush.msra.mxu0 %v25
  %71 = vmatmul.f32.gmra.mxu0 %v37
  %v72 = vpop.f32.mrf.mxu0
  %v73 = vadd.f32 0.0, %v72
  %74 = vmatmul.f32.gmra.mxu0 %v40
  %v75 = vpop.f32.mrf.mxu0
  %v76 = vadd.f32 0.0, %v75
  %77 = vmatmul.f32.gmra.mxu0 %v43
  %v78 = vpop.f32.mrf.mxu0
  %v79 = vadd.f32 0.0, %v78
  %80 = vmatmul.f32.gmra.mxu0 %v46
  %v81 = vpop.f32.mrf.mxu0
  %v82 = vadd.f32 0.0, %v81
  %83 = vdwg.mxu0
  %84 = vmatpush.msra.mxu0 0.0
  %85 = vmatpush.msra.mxu0 0.0
  %86 = vmatpush.msra.mxu0 0.0
  %87 = vmatpush.msra.mxu0 0.0
  %88 = vmatpush.msra.mxu0 0.0
  %89 = vmatpush.msra.mxu0 0.0
  %90 = vmatpush.msra.mxu0 0.0
  %91 = vmatpush.msra.mxu0 0.0
  %92 = vmatpush.msra.mxu0 0.0
  %93 = vmatpush.msra.mxu0 0.0
  %94 = vmatpush.msra.mxu0 0.0
  %95 = vmatpush.msra.mxu0 %v53
  %96 = vmatpush.msra.mxu0 %v32
  %97 = vmatpush.msra.mxu0 %v30
  %98 = vmatpush.msra.mxu0 %v28
  %99 = vmatpush.msra.mxu0 %v26
  %100 = vmatmul.f32.gmra.mxu0 %v37
  %v101 = vpop.f32.mrf.mxu0
  %v102 = vadd.f32 0.0, %v101
  %103 = vmatmul.f32.gmra.mxu0 %v40
  %v104 = vpop.f32.mrf.mxu0
  %v105 = vadd.f32 0.0, %v104
  %106 = vmatmul.f32.gmra.mxu0 %v43
  %v107 = vpop.f32.mrf.mxu0
  %v108 = vadd.f32 0.0, %v107
  %109 = vmatmul.f32.gmra.mxu0 %v46
  %v110 = vpop.f32.mrf.mxu0
  %v111 = vadd.f32 0.0, %v110
  %112 = vdwg.mxu0
  %v113 = vadd.f32 %v73, %v102
  %114 = vadd.xlane.f32.xlu0 %v113
  %v115 = vpop.xlane.xlu0 %114
  %v116 = vadd.f32 %v76, %v105
  %117 = vadd.xlane.f32.xlu0 %v116
  %v118 = vpop.xlane.xlu0 %117
  %v119 = vadd.f32 %v79, %v108
  %120 = vadd.xlane.f32.xlu0 %v119
  %v121 = vpop.xlane.xlu0 %120
  %v122 = vadd.f32 %v82, %v111
  %123 = vadd.xlane.f32.xlu0 %v122
  %v124 = vpop.xlane.xlu0 %123
  %v125 = vrcp.pop 256.0
  %v126 = vmul.f32 256.0, %v125
  %v127 = vsub.f32 1.0, %v126
  %v128 = vmul.f32 %v125, %v127
  %v129 = vadd.f32 %v125, %v128
  %vm130 = vweird.f32 %v125
  %v131 = vsel %vm130, %v125, %v129
  %v132 = vmul.f32 %v115, %v131
  %v133 = vmul.f32 %v118, %v131
  %v134 = vmul.f32 %v121, %v131
  %v135 = vmul.f32 %v124, %v131
  %v136 = vsub.f32 %v73, %v132
  %v137 = vsub.f32 %v102, %v132
  %v138 = vsub.f32 %v76, %v133
  %v139 = vsub.f32 %v105, %v133
  %v140 = vsub.f32 %v79, %v134
  %v141 = vsub.f32 %v108, %v134
  %v142 = vsub.f32 %v82, %v135
  %v143 = vsub.f32 %v111, %v135
  %v144 = vmul.f32 %v136, %v136
  %v145 = vmul.f32 %v137, %v137
  %v146 = vmul.f32 %v138, %v138
  %v147 = vmul.f32 %v139, %v139
  %v148 = vmul.f32 %v140, %v140
  %v149 = vmul.f32 %v141, %v141
  %v150 = vmul.f32 %v142, %v142
  %v151 = vmul.f32 %v143, %v143
  %v152 = vadd.f32 %v144, %v145
  %153 = vadd.xlane.f32.xlu0 %v152
  %v154 = vpop.xlane.xlu0 %153
  %v155 = vadd.f32 %v146, %v147
  %156 = vadd.xlane.f32.xlu0 %v155
  %v157 = vpop.xlane.xlu0 %156
  %v158 = vadd.f32 %v148, %v149
  %159 = vadd.xlane.f32.xlu0 %v158
  %v160 = vpop.xlane.xlu0 %159
  %v161 = vadd.f32 %v150, %v151
  %162 = vadd.xlane.f32.xlu0 %v161
  %v163 = vpop.xlane.xlu0 %162
  %v164 = vmul.f32 %v154, %v131
  %v165 = vmul.f32 %v157, %v131
  %v166 = vmul.f32 %v160, %v131
  %v167 = vmul.f32 %v163, %v131
  %v168 = vadd.f32 %v164, 1e-05
  %v169 = vadd.f32 %v165, 1e-05
  %v170 = vadd.f32 %v166, 1e-05
  %v171 = vadd.f32 %v167, 1e-05
  %v172 = vrsqrt.pop %v168
  %v173 = vmul.f32 %v172, %v168
  %v174 = vmul.f32 %v173, %v172
  %v175 = vmul.f32 0.5, %v174
  %v176 = vsub.f32 1.5, %v175
  %v177 = vmul.f32 %v172, %v176
  %vm178 = vweird.f32 %v168
  %vm179 = vweird.f32 %v172
  %vm180 = vmor %vm178, %vm179
  %v181 = vsel %vm180, %v172, %v177
  %v182 = vrsqrt.pop %v169
  %v183 = vmul.f32 %v182, %v169
  %v184 = vmul.f32 %v183, %v182
  %v185 = vmul.f32 0.5, %v184
  %v186 = vsub.f32 1.5, %v185
  %v187 = vmul.f32 %v182, %v186
  %vm188 = vweird.f32 %v169
  %vm189 = vweird.f32 %v182
  %vm190 = vmor %vm188, %vm189
  %v191 = vsel %vm190, %v182, %v187
  %v192 = vrsqrt.pop %v170
  %v193 = vmul.f32 %v192, %v170
  %v194 = vmul.f32 %v193, %v192
  %v195 = vmul.f32 0.5, %v194
  %v196 = vsub.f32 1.5, %v195
  %v197 = vmul.f32 %v192, %v196
  %vm198 = vweird.f32 %v170
  %vm199 = vweird.f32 %v192
  %vm200 = vmor %vm198, %vm199
  %v201 = vsel %vm200, %v192, %v197
  %v202 = vrsqrt.pop %v171
  %v203 = vmul.f32 %v202, %v171
  %v204 = vmul.f32 %v203, %v202
  %v205 = vmul.f32 0.5, %v204
  %v206 = vsub.f32 1.5, %v205
  %v207 = vmul.f32 %v202, %v206
  %vm208 = vweird.f32 %v171
  %vm209 = vweird.f32 %v202
  %vm210 = vmor %vm208, %vm209
  %v211 = vsel %vm210, %v202, %v207
  %v212 = vmul.f32 %v17, %v181
  %v213 = vmul.f32 %v18, %v191
  %v214 = vmul.f32 %v19, %v201
  %v215 = vmul.f32 %v20, %v211
  %v216 = vmul.f32 %v132, %v212
  %v217 = vmul.f32 %v133, %v213
  %v218 = vmul.f32 %v134, %v214
  %v219 = vmul.f32 %v135, %v215
  %224 = vrot.lane.b32.xlu0 %v216, 1
  %v225 = vpop.permute.xlu0 %224
  %226 = vrot.lane.b32.xlu0 %v217, 1
  %v227 = vpop.permute.xlu0 %226
  %228 = vrot.lane.b32.xlu0 %v218, 1
  %v229 = vpop.permute.xlu0 %228
  %230 = vrot.lane.b32.xlu0 %v219, 1
  %v231 = vpop.permute.xlu0 %230
  %v236 = vsub.f32 %v17, %v225
  %v237 = vsub.f32 %v18, %v227
  %v238 = vsub.f32 %v19, %v229
  %v239 = vsub.f32 %v20, %v231
  %241 = vset.pattern.permute.xlu0 0
  %242 = vperm.xlu0 %241, %v212
  %v243 = vpop.permute.xlu0 %242
  %246 = vset.pattern.permute.xlu0 0
  %247 = vperm.xlu0 %246, %v213
  %v248 = vpop.permute.xlu0 %247
  %251 = vset.pattern.permute.xlu0 0
  %252 = vperm.xlu0 %251, %v214
  %v253 = vpop.permute.xlu0 %252
  %256 = vset.pattern.permute.xlu0 0
  %257 = vperm.xlu0 %256, %v215
  %v258 = vpop.permute.xlu0 %257
  %v260 = vmul.f32 %v73, %v243
  %v261 = vmul.f32 %v102, %v243
  %v262 = vmul.f32 %v76, %v248
  %v263 = vmul.f32 %v105, %v248
  %v264 = vmul.f32 %v79, %v253
  %v265 = vmul.f32 %v108, %v253
  %v266 = vmul.f32 %v82, %v258
  %v267 = vmul.f32 %v111, %v258
  %269 = vset.pattern.permute.xlu0 1
  %270 = vperm.xlu0 %269, %v236
  %v271 = vpop.permute.xlu0 %270
  %274 = vset.pattern.permute.xlu0 1
  %275 = vperm.xlu0 %274, %v237
  %v276 = vpop.permute.xlu0 %275
  %279 = vset.pattern.permute.xlu0 1
  %280 = vperm.xlu0 %279, %v238
  %v281 = vpop.permute.xlu0 %280
  %284 = vset.pattern.permute.xlu0 1
  %285 = vperm.xlu0 %284, %v239
  %v286 = vpop.permute.xlu0 %285
  %v288 = vadd.f32 %v260, %v271
  %v289 = vadd.f32 %v261, %v271
  %v290 = vadd.f32 %v262, %v276
  %v291 = vadd.f32 %v263, %v276
  %v292 = vadd.f32 %v264, %v281
  %v293 = vadd.f32 %v265, %v281
  %v294 = vadd.f32 %v266, %v286
  %v295 = vadd.f32 %v267, %v286
  %v296 = vmax.f32 %v288, 0.0
  %v297 = vmax.f32 %v289, 0.0
  %v298 = vmax.f32 %v290, 0.0
  %v299 = vmax.f32 %v291, 0.0
  %v300 = vmax.f32 %v292, 0.0
  %v301 = vmax.f32 %v293, 0.0
  %v302 = vmax.f32 %v294, 0.0
  %v303 = vmax.f32 %v295, 0.0
  %s304 = scalar_lea.vmem %s0, 80
  %v305 = vld [vmem:[%s304] sm:$0xff]
  %v306 = vld [vmem:[%s304 + $0x8] sm:$0xff]
  %v307 = vld [vmem:[%s304 + $0x10] sm:$0xff]
  %v308 = vld [vmem:[%s304 + $0x18] sm:$0xff]
  %v309 = vld [vmem:[%s304 + $0x20] sm:$0xff]
  %v310 = vld [vmem:[%s304 + $0x28] sm:$0xff]
  %v311 = vld [vmem:[%s304 + $0x30] sm:$0xff]
  %v312 = vld [vmem:[%s304 + $0x38] sm:$0xff]
  %v313 = vld [vmem:[%s304 + $0x40] sm:$0xf]
  %v314 = vld [vmem:[%s304 + $0x48] sm:$0xf]
  %v316 = vsel %vm48, %v313, 0
  %v319 = vsel %vm48, %v314, 0
  %321 = vmatpush.msra.mxu0 0.0
  %322 = vmatpush.msra.mxu0 0.0
  %323 = vmatpush.msra.mxu0 0.0
  %324 = vmatpush.msra.mxu0 0.0
  %325 = vmatpush.msra.mxu0 0.0
  %326 = vmatpush.msra.mxu0 0.0
  %327 = vmatpush.msra.mxu0 0.0
  %328 = vmatpush.msra.mxu0 0.0
  %329 = vmatpush.msra.mxu0 0.0
  %330 = vmatpush.msra.mxu0 0.0
  %331 = vmatpush.msra.mxu0 0.0
  %332 = vmatpush.msra.mxu0 %v316
  %333 = vmatpush.msra.mxu0 %v311
  %334 = vmatpush.msra.mxu0 %v309
  %335 = vmatpush.msra.mxu0 %v307
  %336 = vmatpush.msra.mxu0 %v305
  %337 = vmatmul.f32.gmra.mxu0 %v37
  %v338 = vpop.f32.mrf.mxu0
  %v339 = vadd.f32 0.0, %v338
  %340 = vmatmul.f32.gmra.mxu0 %v40
  %v341 = vpop.f32.mrf.mxu0
  %v342 = vadd.f32 0.0, %v341
  %343 = vmatmul.f32.gmra.mxu0 %v43
  %v344 = vpop.f32.mrf.mxu0
  %v345 = vadd.f32 0.0, %v344
  %346 = vmatmul.f32.gmra.mxu0 %v46
  %v347 = vpop.f32.mrf.mxu0
  %v348 = vadd.f32 0.0, %v347
  %349 = vdwg.mxu0
  %350 = vmatpush.msra.mxu0 0.0
  %351 = vmatpush.msra.mxu0 0.0
  %352 = vmatpush.msra.mxu0 0.0
  %353 = vmatpush.msra.mxu0 0.0
  %354 = vmatpush.msra.mxu0 0.0
  %355 = vmatpush.msra.mxu0 0.0
  %356 = vmatpush.msra.mxu0 0.0
  %357 = vmatpush.msra.mxu0 0.0
  %358 = vmatpush.msra.mxu0 0.0
  %359 = vmatpush.msra.mxu0 0.0
  %360 = vmatpush.msra.mxu0 0.0
  %361 = vmatpush.msra.mxu0 %v319
  %362 = vmatpush.msra.mxu0 %v312
  %363 = vmatpush.msra.mxu0 %v310
  %364 = vmatpush.msra.mxu0 %v308
  %365 = vmatpush.msra.mxu0 %v306
  %366 = vmatmul.f32.gmra.mxu0 %v37
  %v367 = vpop.f32.mrf.mxu0
  %v368 = vadd.f32 0.0, %v367
  %369 = vmatmul.f32.gmra.mxu0 %v40
  %v370 = vpop.f32.mrf.mxu0
  %v371 = vadd.f32 0.0, %v370
  %372 = vmatmul.f32.gmra.mxu0 %v43
  %v373 = vpop.f32.mrf.mxu0
  %v374 = vadd.f32 0.0, %v373
  %375 = vmatmul.f32.gmra.mxu0 %v46
  %v376 = vpop.f32.mrf.mxu0
  %v377 = vadd.f32 0.0, %v376
  %378 = vdwg.mxu0
  %v379 = vadd.f32 %v339, %v368
  %380 = vadd.xlane.f32.xlu0 %v379
  %v381 = vpop.xlane.xlu0 %380
  %v382 = vadd.f32 %v342, %v371
  %383 = vadd.xlane.f32.xlu0 %v382
  %v384 = vpop.xlane.xlu0 %383
  %v385 = vadd.f32 %v345, %v374
  %386 = vadd.xlane.f32.xlu0 %v385
  %v387 = vpop.xlane.xlu0 %386
  %v388 = vadd.f32 %v348, %v377
  %389 = vadd.xlane.f32.xlu0 %v388
  %v390 = vpop.xlane.xlu0 %389
  %v391 = vmul.f32 %v381, %v131
  %v392 = vmul.f32 %v384, %v131
  %v393 = vmul.f32 %v387, %v131
  %v394 = vmul.f32 %v390, %v131
  %v395 = vsub.f32 %v339, %v391
  %v396 = vsub.f32 %v368, %v391
  %v397 = vsub.f32 %v342, %v392
  %v398 = vsub.f32 %v371, %v392
  %v399 = vsub.f32 %v345, %v393
  %v400 = vsub.f32 %v374, %v393
  %v401 = vsub.f32 %v348, %v394
  %v402 = vsub.f32 %v377, %v394
  %v403 = vmul.f32 %v395, %v395
  %v404 = vmul.f32 %v396, %v396
  %v405 = vmul.f32 %v397, %v397
  %v406 = vmul.f32 %v398, %v398
  %v407 = vmul.f32 %v399, %v399
  %v408 = vmul.f32 %v400, %v400
  %v409 = vmul.f32 %v401, %v401
  %v410 = vmul.f32 %v402, %v402
  %v411 = vadd.f32 %v403, %v404
  %412 = vadd.xlane.f32.xlu0 %v411
  %v413 = vpop.xlane.xlu0 %412
  %v414 = vadd.f32 %v405, %v406
  %415 = vadd.xlane.f32.xlu0 %v414
  %v416 = vpop.xlane.xlu0 %415
  %v417 = vadd.f32 %v407, %v408
  %418 = vadd.xlane.f32.xlu0 %v417
  %v419 = vpop.xlane.xlu0 %418
  %v420 = vadd.f32 %v409, %v410
  %421 = vadd.xlane.f32.xlu0 %v420
  %v422 = vpop.xlane.xlu0 %421
  %v423 = vmul.f32 %v413, %v131
  %v424 = vmul.f32 %v416, %v131
  %v425 = vmul.f32 %v419, %v131
  %v426 = vmul.f32 %v422, %v131
  %v427 = vadd.f32 %v423, 1e-05
  %v428 = vadd.f32 %v424, 1e-05
  %v429 = vadd.f32 %v425, 1e-05
  %v430 = vadd.f32 %v426, 1e-05
  %v431 = vrsqrt.pop %v427
  %v432 = vmul.f32 %v431, %v427
  %v433 = vmul.f32 %v432, %v431
  %v434 = vmul.f32 0.5, %v433
  %v435 = vsub.f32 1.5, %v434
  %v436 = vmul.f32 %v431, %v435
  %vm437 = vweird.f32 %v427
  %vm438 = vweird.f32 %v431
  %vm439 = vmor %vm437, %vm438
  %v440 = vsel %vm439, %v431, %v436
  %v441 = vrsqrt.pop %v428
  %v442 = vmul.f32 %v441, %v428
  %v443 = vmul.f32 %v442, %v441
  %v444 = vmul.f32 0.5, %v443
  %v445 = vsub.f32 1.5, %v444
  %v446 = vmul.f32 %v441, %v445
  %vm447 = vweird.f32 %v428
  %vm448 = vweird.f32 %v441
  %vm449 = vmor %vm447, %vm448
  %v450 = vsel %vm449, %v441, %v446
  %v451 = vrsqrt.pop %v429
  %v452 = vmul.f32 %v451, %v429
  %v453 = vmul.f32 %v452, %v451
  %v454 = vmul.f32 0.5, %v453
  %v455 = vsub.f32 1.5, %v454
  %v456 = vmul.f32 %v451, %v455
  %vm457 = vweird.f32 %v429
  %vm458 = vweird.f32 %v451
  %vm459 = vmor %vm457, %vm458
  %v460 = vsel %vm459, %v451, %v456
  %v461 = vrsqrt.pop %v430
  %v462 = vmul.f32 %v461, %v430
  %v463 = vmul.f32 %v462, %v461
  %v464 = vmul.f32 0.5, %v463
  %v465 = vsub.f32 1.5, %v464
  %v466 = vmul.f32 %v461, %v465
  %vm467 = vweird.f32 %v430
  %vm468 = vweird.f32 %v461
  %vm469 = vmor %vm467, %vm468
  %v470 = vsel %vm469, %v461, %v466
  %v471 = vmul.f32 %v17, %v440
  %v472 = vmul.f32 %v18, %v450
  %v473 = vmul.f32 %v19, %v460
  %v474 = vmul.f32 %v20, %v470
  %v475 = vmul.f32 %v391, %v471
  %v476 = vmul.f32 %v392, %v472
  %v477 = vmul.f32 %v393, %v473
  %v478 = vmul.f32 %v394, %v474
  %483 = vrot.lane.b32.xlu0 %v475, 1
  %v484 = vpop.permute.xlu0 %483
  %485 = vrot.lane.b32.xlu0 %v476, 1
  %v486 = vpop.permute.xlu0 %485
  %487 = vrot.lane.b32.xlu0 %v477, 1
  %v488 = vpop.permute.xlu0 %487
  %489 = vrot.lane.b32.xlu0 %v478, 1
  %v490 = vpop.permute.xlu0 %489
  %v495 = vsub.f32 %v17, %v484
  %v496 = vsub.f32 %v18, %v486
  %v497 = vsub.f32 %v19, %v488
  %v498 = vsub.f32 %v20, %v490
  %500 = vset.pattern.permute.xlu0 0
  %501 = vperm.xlu0 %500, %v471
  %v502 = vpop.permute.xlu0 %501
  %505 = vset.pattern.permute.xlu0 0
  %506 = vperm.xlu0 %505, %v472
  %v507 = vpop.permute.xlu0 %506
  %510 = vset.pattern.permute.xlu0 0
  %511 = vperm.xlu0 %510, %v473
  %v512 = vpop.permute.xlu0 %511
  %515 = vset.pattern.permute.xlu0 0
  %516 = vperm.xlu0 %515, %v474
  %v517 = vpop.permute.xlu0 %516
  %v519 = vmul.f32 %v339, %v502
  %v520 = vmul.f32 %v368, %v502
  %v521 = vmul.f32 %v342, %v507
  %v522 = vmul.f32 %v371, %v507
  %v523 = vmul.f32 %v345, %v512
  %v524 = vmul.f32 %v374, %v512
  %v525 = vmul.f32 %v348, %v517
  %v526 = vmul.f32 %v377, %v517
  %528 = vset.pattern.permute.xlu0 1
  %529 = vperm.xlu0 %528, %v495
  %v530 = vpop.permute.xlu0 %529
  %533 = vset.pattern.permute.xlu0 1
  %534 = vperm.xlu0 %533, %v496
  %v535 = vpop.permute.xlu0 %534
  %538 = vset.pattern.permute.xlu0 1
  %539 = vperm.xlu0 %538, %v497
  %v540 = vpop.permute.xlu0 %539
  %543 = vset.pattern.permute.xlu0 1
  %544 = vperm.xlu0 %543, %v498
  %v545 = vpop.permute.xlu0 %544
  %v547 = vadd.f32 %v519, %v530
  %v548 = vadd.f32 %v520, %v530
  %v549 = vadd.f32 %v521, %v535
  %v550 = vadd.f32 %v522, %v535
  %v551 = vadd.f32 %v523, %v540
  %v552 = vadd.f32 %v524, %v540
  %v553 = vadd.f32 %v525, %v545
  %v554 = vadd.f32 %v526, %v545
  %v555 = vmax.f32 %v547, 0.0
  %v556 = vmax.f32 %v548, 0.0
  %v557 = vmax.f32 %v549, 0.0
  %v558 = vmax.f32 %v550, 0.0
  %v559 = vmax.f32 %v551, 0.0
  %v560 = vmax.f32 %v552, 0.0
  %v561 = vmax.f32 %v553, 0.0
  %v562 = vmax.f32 %v554, 0.0
  %v563 = vld [vmem:[%s3] sm:$0xff]
  %v564 = vld [vmem:[%s3 + $0x8] sm:$0xff]
  %v565 = vld [vmem:[%s3 + $0x10] sm:$0xff]
  %v566 = vld [vmem:[%s3 + $0x18] sm:$0xff]
  %v567 = vld [vmem:[%s3 + $0x20] sm:$0xff]
  %v568 = vld [vmem:[%s3 + $0x28] sm:$0xff]
  %v569 = vld [vmem:[%s3 + $0x30] sm:$0xff]
  %v570 = vld [vmem:[%s3 + $0x38] sm:$0xff]
  %v571 = vld [vmem:[%s3 + $0x40] sm:$0xff]
  %v572 = vld [vmem:[%s3 + $0x48] sm:$0xff]
  %v573 = vld [vmem:[%s3 + $0x50] sm:$0xff]
  %v574 = vld [vmem:[%s3 + $0x58] sm:$0xff]
  %v575 = vld [vmem:[%s3 + $0x60] sm:$0xff]
  %v576 = vld [vmem:[%s3 + $0x68] sm:$0xff]
  %v577 = vld [vmem:[%s3 + $0x70] sm:$0xff]
  %v578 = vld [vmem:[%s3 + $0x78] sm:$0xff]
  %v579 = vld [vmem:[%s3 + $0x80] sm:$0xff]
  %v580 = vld [vmem:[%s3 + $0x88] sm:$0xff]
  %v581 = vld [vmem:[%s3 + $0x90] sm:$0xff]
  %v582 = vld [vmem:[%s3 + $0x98] sm:$0xff]
  %v583 = vld [vmem:[%s3 + $0xa0] sm:$0xff]
  %v584 = vld [vmem:[%s3 + $0xa8] sm:$0xff]
  %v585 = vld [vmem:[%s3 + $0xb0] sm:$0xff]
  %v586 = vld [vmem:[%s3 + $0xb8] sm:$0xff]
  %v587 = vld [vmem:[%s3 + $0xc0] sm:$0xff]
  %v588 = vld [vmem:[%s3 + $0xc8] sm:$0xff]
  %v589 = vld [vmem:[%s3 + $0xd0] sm:$0xff]
  %v590 = vld [vmem:[%s3 + $0xd8] sm:$0xff]
  %v591 = vld [vmem:[%s3 + $0xe0] sm:$0xff]
  %v592 = vld [vmem:[%s3 + $0xe8] sm:$0xff]
  %v593 = vld [vmem:[%s3 + $0xf0] sm:$0xff]
  %v594 = vld [vmem:[%s3 + $0xf8] sm:$0xff]
  %v595 = vld [vmem:[%s3 + $0x100] sm:$0xff]
  %v596 = vld [vmem:[%s3 + $0x108] sm:$0xff]
  %v597 = vld [vmem:[%s3 + $0x110] sm:$0xff]
  %v598 = vld [vmem:[%s3 + $0x118] sm:$0xff]
  %v599 = vld [vmem:[%s3 + $0x120] sm:$0xff]
  %v600 = vld [vmem:[%s3 + $0x128] sm:$0xff]
  %v601 = vld [vmem:[%s3 + $0x130] sm:$0xff]
  %v602 = vld [vmem:[%s3 + $0x138] sm:$0xff]
  %v603 = vld [vmem:[%s3 + $0x140] sm:$0xff]
  %v604 = vld [vmem:[%s3 + $0x148] sm:$0xff]
  %v605 = vld [vmem:[%s3 + $0x150] sm:$0xff]
  %v606 = vld [vmem:[%s3 + $0x158] sm:$0xff]
  %v607 = vld [vmem:[%s3 + $0x160] sm:$0xff]
  %v608 = vld [vmem:[%s3 + $0x168] sm:$0xff]
  %v609 = vld [vmem:[%s3 + $0x170] sm:$0xff]
  %v610 = vld [vmem:[%s3 + $0x178] sm:$0xff]
  %v611 = vld [vmem:[%s3 + $0x180] sm:$0xff]
  %v612 = vld [vmem:[%s3 + $0x188] sm:$0xff]
  %v613 = vld [vmem:[%s3 + $0x190] sm:$0xff]
  %v614 = vld [vmem:[%s3 + $0x198] sm:$0xff]
  %v615 = vld [vmem:[%s3 + $0x1a0] sm:$0xff]
  %v616 = vld [vmem:[%s3 + $0x1a8] sm:$0xff]
  %v617 = vld [vmem:[%s3 + $0x1b0] sm:$0xff]
  %v618 = vld [vmem:[%s3 + $0x1b8] sm:$0xff]
  %v619 = vld [vmem:[%s3 + $0x1c0] sm:$0xff]
  %v620 = vld [vmem:[%s3 + $0x1c8] sm:$0xff]
  %v621 = vld [vmem:[%s3 + $0x1d0] sm:$0xff]
  %v622 = vld [vmem:[%s3 + $0x1d8] sm:$0xff]
  %v623 = vld [vmem:[%s3 + $0x1e0] sm:$0xff]
  %v624 = vld [vmem:[%s3 + $0x1e8] sm:$0xff]
  %v625 = vld [vmem:[%s3 + $0x1f0] sm:$0xff]
  %v626 = vld [vmem:[%s3 + $0x1f8] sm:$0xff]
  %v627 = vld [vmem:[%s3 + $0x200] sm:$0xff]
  %v628 = vld [vmem:[%s3 + $0x208] sm:$0xff]
  %v629 = vld [vmem:[%s3 + $0x210] sm:$0xff]
  %v630 = vld [vmem:[%s3 + $0x218] sm:$0xff]
  %v631 = vld [vmem:[%s3 + $0x220] sm:$0xff]
  %v632 = vld [vmem:[%s3 + $0x228] sm:$0xff]
  %v633 = vld [vmem:[%s3 + $0x230] sm:$0xff]
  %v634 = vld [vmem:[%s3 + $0x238] sm:$0xff]
  %v635 = vld [vmem:[%s3 + $0x240] sm:$0xff]
  %v636 = vld [vmem:[%s3 + $0x248] sm:$0xff]
  %v637 = vld [vmem:[%s3 + $0x250] sm:$0xff]
  %v638 = vld [vmem:[%s3 + $0x258] sm:$0xff]
  %v639 = vld [vmem:[%s3 + $0x260] sm:$0xff]
  %v640 = vld [vmem:[%s3 + $0x268] sm:$0xff]
  %v641 = vld [vmem:[%s3 + $0x270] sm:$0xff]
  %v642 = vld [vmem:[%s3 + $0x278] sm:$0xff]
  %v643 = vld [vmem:[%s3 + $0x280] sm:$0xff]
  %v644 = vld [vmem:[%s3 + $0x288] sm:$0xff]
  %v645 = vld [vmem:[%s3 + $0x290] sm:$0xff]
  %v646 = vld [vmem:[%s3 + $0x298] sm:$0xff]
  %v647 = vld [vmem:[%s3 + $0x2a0] sm:$0xff]
  %v648 = vld [vmem:[%s3 + $0x2a8] sm:$0xff]
  %v649 = vld [vmem:[%s3 + $0x2b0] sm:$0xff]
  %v650 = vld [vmem:[%s3 + $0x2b8] sm:$0xff]
  %v651 = vld [vmem:[%s3 + $0x2c0] sm:$0xff]
  %v652 = vld [vmem:[%s3 + $0x2c8] sm:$0xff]
  %v653 = vld [vmem:[%s3 + $0x2d0] sm:$0xff]
  %v654 = vld [vmem:[%s3 + $0x2d8] sm:$0xff]
  %v655 = vld [vmem:[%s3 + $0x2e0] sm:$0xff]
  %v656 = vld [vmem:[%s3 + $0x2e8] sm:$0xff]
  %v657 = vld [vmem:[%s3 + $0x2f0] sm:$0xff]
  %v658 = vld [vmem:[%s3 + $0x2f8] sm:$0xff]
  %v659 = vld [vmem:[%s3 + $0x300] sm:$0xff]
  %v660 = vld [vmem:[%s3 + $0x308] sm:$0xff]
  %v661 = vld [vmem:[%s3 + $0x310] sm:$0xff]
  %v662 = vld [vmem:[%s3 + $0x318] sm:$0xff]
  %v663 = vld [vmem:[%s3 + $0x320] sm:$0xff]
  %v664 = vld [vmem:[%s3 + $0x328] sm:$0xff]
  %v665 = vld [vmem:[%s3 + $0x330] sm:$0xff]
  %v666 = vld [vmem:[%s3 + $0x338] sm:$0xff]
  %v667 = vld [vmem:[%s3 + $0x340] sm:$0xff]
  %v668 = vld [vmem:[%s3 + $0x348] sm:$0xff]
  %v669 = vld [vmem:[%s3 + $0x350] sm:$0xff]
  %v670 = vld [vmem:[%s3 + $0x358] sm:$0xff]
  %v671 = vld [vmem:[%s3 + $0x360] sm:$0xff]
  %v672 = vld [vmem:[%s3 + $0x368] sm:$0xff]
  %v673 = vld [vmem:[%s3 + $0x370] sm:$0xff]
  %v674 = vld [vmem:[%s3 + $0x378] sm:$0xff]
  %v675 = vld [vmem:[%s3 + $0x380] sm:$0xff]
  %v676 = vld [vmem:[%s3 + $0x388] sm:$0xff]
  %v677 = vld [vmem:[%s3 + $0x390] sm:$0xff]
  %v678 = vld [vmem:[%s3 + $0x398] sm:$0xff]
  %v679 = vld [vmem:[%s3 + $0x3a0] sm:$0xff]
  %v680 = vld [vmem:[%s3 + $0x3a8] sm:$0xff]
  %v681 = vld [vmem:[%s3 + $0x3b0] sm:$0xff]
  %v682 = vld [vmem:[%s3 + $0x3b8] sm:$0xff]
  %v683 = vld [vmem:[%s3 + $0x3c0] sm:$0xff]
  %v684 = vld [vmem:[%s3 + $0x3c8] sm:$0xff]
  %v685 = vld [vmem:[%s3 + $0x3d0] sm:$0xff]
  %v686 = vld [vmem:[%s3 + $0x3d8] sm:$0xff]
  %v687 = vld [vmem:[%s3 + $0x3e0] sm:$0xff]
  %v688 = vld [vmem:[%s3 + $0x3e8] sm:$0xff]
  %v689 = vld [vmem:[%s3 + $0x3f0] sm:$0xff]
  %v690 = vld [vmem:[%s3 + $0x3f8] sm:$0xff]
  %v691 = vld [vmem:[%s3 + $0x400] sm:$0xff]
  %v692 = vld [vmem:[%s3 + $0x408] sm:$0xff]
  %v693 = vld [vmem:[%s3 + $0x410] sm:$0xff]
  %v694 = vld [vmem:[%s3 + $0x418] sm:$0xff]
  %v695 = vld [vmem:[%s3 + $0x420] sm:$0xff]
  %v696 = vld [vmem:[%s3 + $0x428] sm:$0xff]
  %v697 = vld [vmem:[%s3 + $0x430] sm:$0xff]
  %v698 = vld [vmem:[%s3 + $0x438] sm:$0xff]
  %v699 = vld [vmem:[%s3 + $0x440] sm:$0xff]
  %v700 = vld [vmem:[%s3 + $0x448] sm:$0xff]
  %v701 = vld [vmem:[%s3 + $0x450] sm:$0xff]
  %v702 = vld [vmem:[%s3 + $0x458] sm:$0xff]
  %v703 = vld [vmem:[%s3 + $0x460] sm:$0xff]
  %v704 = vld [vmem:[%s3 + $0x468] sm:$0xff]
  %v705 = vld [vmem:[%s3 + $0x470] sm:$0xff]
  %v706 = vld [vmem:[%s3 + $0x478] sm:$0xff]
  %v707 = vld [vmem:[%s3 + $0x480] sm:$0xff]
  %v708 = vld [vmem:[%s3 + $0x488] sm:$0xff]
  %v709 = vld [vmem:[%s3 + $0x490] sm:$0xff]
  %v710 = vld [vmem:[%s3 + $0x498] sm:$0xff]
  %v711 = vld [vmem:[%s3 + $0x4a0] sm:$0xff]
  %v712 = vld [vmem:[%s3 + $0x4a8] sm:$0xff]
  %v713 = vld [vmem:[%s3 + $0x4b0] sm:$0xff]
  %v714 = vld [vmem:[%s3 + $0x4b8] sm:$0xff]
  %v715 = vld [vmem:[%s3 + $0x4c0] sm:$0xff]
  %v716 = vld [vmem:[%s3 + $0x4c8] sm:$0xff]
  %v717 = vld [vmem:[%s3 + $0x4d0] sm:$0xff]
  %v718 = vld [vmem:[%s3 + $0x4d8] sm:$0xff]
  %v719 = vld [vmem:[%s3 + $0x4e0] sm:$0xff]
  %v720 = vld [vmem:[%s3 + $0x4e8] sm:$0xff]
  %v721 = vld [vmem:[%s3 + $0x4f0] sm:$0xff]
  %v722 = vld [vmem:[%s3 + $0x4f8] sm:$0xff]
  %v723 = vld [vmem:[%s3 + $0x500] sm:$0xff]
  %v724 = vld [vmem:[%s3 + $0x508] sm:$0xff]
  %v725 = vld [vmem:[%s3 + $0x510] sm:$0xff]
  %v726 = vld [vmem:[%s3 + $0x518] sm:$0xff]
  %v727 = vld [vmem:[%s3 + $0x520] sm:$0xff]
  %v728 = vld [vmem:[%s3 + $0x528] sm:$0xff]
  %v729 = vld [vmem:[%s3 + $0x530] sm:$0xff]
  %v730 = vld [vmem:[%s3 + $0x538] sm:$0xff]
  %v731 = vld [vmem:[%s3 + $0x540] sm:$0xff]
  %v732 = vld [vmem:[%s3 + $0x548] sm:$0xff]
  %v733 = vld [vmem:[%s3 + $0x550] sm:$0xff]
  %v734 = vld [vmem:[%s3 + $0x558] sm:$0xff]
  %v735 = vld [vmem:[%s3 + $0x560] sm:$0xff]
  %v736 = vld [vmem:[%s3 + $0x568] sm:$0xff]
  %v737 = vld [vmem:[%s3 + $0x570] sm:$0xff]
  %v738 = vld [vmem:[%s3 + $0x578] sm:$0xff]
  %v739 = vld [vmem:[%s3 + $0x580] sm:$0xff]
  %v740 = vld [vmem:[%s3 + $0x588] sm:$0xff]
  %v741 = vld [vmem:[%s3 + $0x590] sm:$0xff]
  %v742 = vld [vmem:[%s3 + $0x598] sm:$0xff]
  %v743 = vld [vmem:[%s3 + $0x5a0] sm:$0xff]
  %v744 = vld [vmem:[%s3 + $0x5a8] sm:$0xff]
  %v745 = vld [vmem:[%s3 + $0x5b0] sm:$0xff]
  %v746 = vld [vmem:[%s3 + $0x5b8] sm:$0xff]
  %v747 = vld [vmem:[%s3 + $0x5c0] sm:$0xff]
  %v748 = vld [vmem:[%s3 + $0x5c8] sm:$0xff]
  %v749 = vld [vmem:[%s3 + $0x5d0] sm:$0xff]
  %v750 = vld [vmem:[%s3 + $0x5d8] sm:$0xff]
  %v751 = vld [vmem:[%s3 + $0x5e0] sm:$0xff]
  %v752 = vld [vmem:[%s3 + $0x5e8] sm:$0xff]
  %v753 = vld [vmem:[%s3 + $0x5f0] sm:$0xff]
  %v754 = vld [vmem:[%s3 + $0x5f8] sm:$0xff]
  %v755 = vld [vmem:[%s3 + $0x600] sm:$0xff]
  %v756 = vld [vmem:[%s3 + $0x608] sm:$0xff]
  %v757 = vld [vmem:[%s3 + $0x610] sm:$0xff]
  %v758 = vld [vmem:[%s3 + $0x618] sm:$0xff]
  %v759 = vld [vmem:[%s3 + $0x620] sm:$0xff]
  %v760 = vld [vmem:[%s3 + $0x628] sm:$0xff]
  %v761 = vld [vmem:[%s3 + $0x630] sm:$0xff]
  %v762 = vld [vmem:[%s3 + $0x638] sm:$0xff]
  %v763 = vld [vmem:[%s3 + $0x640] sm:$0xff]
  %v764 = vld [vmem:[%s3 + $0x648] sm:$0xff]
  %v765 = vld [vmem:[%s3 + $0x650] sm:$0xff]
  %v766 = vld [vmem:[%s3 + $0x658] sm:$0xff]
  %v767 = vld [vmem:[%s3 + $0x660] sm:$0xff]
  %v768 = vld [vmem:[%s3 + $0x668] sm:$0xff]
  %v769 = vld [vmem:[%s3 + $0x670] sm:$0xff]
  %v770 = vld [vmem:[%s3 + $0x678] sm:$0xff]
  %v771 = vld [vmem:[%s3 + $0x680] sm:$0xff]
  %v772 = vld [vmem:[%s3 + $0x688] sm:$0xff]
  %v773 = vld [vmem:[%s3 + $0x690] sm:$0xff]
  %v774 = vld [vmem:[%s3 + $0x698] sm:$0xff]
  %v775 = vld [vmem:[%s3 + $0x6a0] sm:$0xff]
  %v776 = vld [vmem:[%s3 + $0x6a8] sm:$0xff]
  %v777 = vld [vmem:[%s3 + $0x6b0] sm:$0xff]
  %v778 = vld [vmem:[%s3 + $0x6b8] sm:$0xff]
  %v779 = vld [vmem:[%s3 + $0x6c0] sm:$0xff]
  %v780 = vld [vmem:[%s3 + $0x6c8] sm:$0xff]
  %v781 = vld [vmem:[%s3 + $0x6d0] sm:$0xff]
  %v782 = vld [vmem:[%s3 + $0x6d8] sm:$0xff]
  %v783 = vld [vmem:[%s3 + $0x6e0] sm:$0xff]
  %v784 = vld [vmem:[%s3 + $0x6e8] sm:$0xff]
  %v785 = vld [vmem:[%s3 + $0x6f0] sm:$0xff]
  %v786 = vld [vmem:[%s3 + $0x6f8] sm:$0xff]
  %v787 = vld [vmem:[%s3 + $0x700] sm:$0xff]
  %v788 = vld [vmem:[%s3 + $0x708] sm:$0xff]
  %v789 = vld [vmem:[%s3 + $0x710] sm:$0xff]
  %v790 = vld [vmem:[%s3 + $0x718] sm:$0xff]
  %v791 = vld [vmem:[%s3 + $0x720] sm:$0xff]
  %v792 = vld [vmem:[%s3 + $0x728] sm:$0xff]
  %v793 = vld [vmem:[%s3 + $0x730] sm:$0xff]
  %v794 = vld [vmem:[%s3 + $0x738] sm:$0xff]
  %v795 = vld [vmem:[%s3 + $0x740] sm:$0xff]
  %v796 = vld [vmem:[%s3 + $0x748] sm:$0xff]
  %v797 = vld [vmem:[%s3 + $0x750] sm:$0xff]
  %v798 = vld [vmem:[%s3 + $0x758] sm:$0xff]
  %v799 = vld [vmem:[%s3 + $0x760] sm:$0xff]
  %v800 = vld [vmem:[%s3 + $0x768] sm:$0xff]
  %v801 = vld [vmem:[%s3 + $0x770] sm:$0xff]
  %v802 = vld [vmem:[%s3 + $0x778] sm:$0xff]
  %v803 = vld [vmem:[%s3 + $0x780] sm:$0xff]
  %v804 = vld [vmem:[%s3 + $0x788] sm:$0xff]
  %v805 = vld [vmem:[%s3 + $0x790] sm:$0xff]
  %v806 = vld [vmem:[%s3 + $0x798] sm:$0xff]
  %v807 = vld [vmem:[%s3 + $0x7a0] sm:$0xff]
  %v808 = vld [vmem:[%s3 + $0x7a8] sm:$0xff]
  %v809 = vld [vmem:[%s3 + $0x7b0] sm:$0xff]
  %v810 = vld [vmem:[%s3 + $0x7b8] sm:$0xff]
  %v811 = vld [vmem:[%s3 + $0x7c0] sm:$0xff]
  %v812 = vld [vmem:[%s3 + $0x7c8] sm:$0xff]
  %v813 = vld [vmem:[%s3 + $0x7d0] sm:$0xff]
  %v814 = vld [vmem:[%s3 + $0x7d8] sm:$0xff]
  %v815 = vld [vmem:[%s3 + $0x7e0] sm:$0xff]
  %v816 = vld [vmem:[%s3 + $0x7e8] sm:$0xff]
  %v817 = vld [vmem:[%s3 + $0x7f0] sm:$0xff]
  %v818 = vld [vmem:[%s3 + $0x7f8] sm:$0xff]
  %819 = vmatpush.msra.mxu0 %v683
  %820 = vmatpush.msra.mxu0 %v675
  %821 = vmatpush.msra.mxu0 %v667
  %822 = vmatpush.msra.mxu0 %v659
  %823 = vmatpush.msra.mxu0 %v651
  %824 = vmatpush.msra.mxu0 %v643
  %825 = vmatpush.msra.mxu0 %v635
  %826 = vmatpush.msra.mxu0 %v627
  %827 = vmatpush.msra.mxu0 %v619
  %828 = vmatpush.msra.mxu0 %v611
  %829 = vmatpush.msra.mxu0 %v603
  %830 = vmatpush.msra.mxu0 %v595
  %831 = vmatpush.msra.mxu0 %v587
  %832 = vmatpush.msra.mxu0 %v579
  %833 = vmatpush.msra.mxu0 %v571
  %834 = vmatpush.msra.mxu0 %v563
  %835 = vmatmul.f32.gmra.mxu0 %v296
  %v836 = vpop.f32.mrf.mxu0
  %v837 = vadd.f32 0.0, %v836
  %838 = vmatmul.f32.gmra.mxu0 %v298
  %v839 = vpop.f32.mrf.mxu0
  %v840 = vadd.f32 0.0, %v839
  %841 = vmatmul.f32.gmra.mxu0 %v300
  %v842 = vpop.f32.mrf.mxu0
  %v843 = vadd.f32 0.0, %v842
  %844 = vmatmul.f32.gmra.mxu0 %v302
  %v845 = vpop.f32.mrf.mxu0
  %v846 = vadd.f32 0.0, %v845
  %847 = vmatmul.f32.gmra.mxu0 %v555
  %v848 = vpop.f32.mrf.mxu0
  %v849 = vadd.f32 0.0, %v848
  %850 = vmatmul.f32.gmra.mxu0 %v557
  %v851 = vpop.f32.mrf.mxu0
  %v852 = vadd.f32 0.0, %v851
  %853 = vmatmul.f32.gmra.mxu0 %v559
  %v854 = vpop.f32.mrf.mxu0
  %v855 = vadd.f32 0.0, %v854
  %856 = vmatmul.f32.gmra.mxu0 %v561
  %v857 = vpop.f32.mrf.mxu0
  %v858 = vadd.f32 0.0, %v857
  %859 = vdwg.mxu0
  %860 = vmatpush.msra.mxu0 %v811
  %861 = vmatpush.msra.mxu0 %v803
  %862 = vmatpush.msra.mxu0 %v795
  %863 = vmatpush.msra.mxu0 %v787
  %864 = vmatpush.msra.mxu0 %v779
  %865 = vmatpush.msra.mxu0 %v771
  %866 = vmatpush.msra.mxu0 %v763
  %867 = vmatpush.msra.mxu0 %v755
  %868 = vmatpush.msra.mxu0 %v747
  %869 = vmatpush.msra.mxu0 %v739
  %870 = vmatpush.msra.mxu0 %v731
  %871 = vmatpush.msra.mxu0 %v723
  %872 = vmatpush.msra.mxu0 %v715
  %873 = vmatpush.msra.mxu0 %v707
  %874 = vmatpush.msra.mxu0 %v699
  %875 = vmatpush.msra.mxu0 %v691
  %876 = vmatmul.f32.gmra.mxu0 %v297
  %v877 = vpop.f32.mrf.mxu0
  %v878 = vadd.f32 %v837, %v877
  %879 = vmatmul.f32.gmra.mxu0 %v299
  %v880 = vpop.f32.mrf.mxu0
  %v881 = vadd.f32 %v840, %v880
  %882 = vmatmul.f32.gmra.mxu0 %v301
  %v883 = vpop.f32.mrf.mxu0
  %v884 = vadd.f32 %v843, %v883
  %885 = vmatmul.f32.gmra.mxu0 %v303
  %v886 = vpop.f32.mrf.mxu0
  %v887 = vadd.f32 %v846, %v886
  %888 = vmatmul.f32.gmra.mxu0 %v556
  %v889 = vpop.f32.mrf.mxu0
  %v890 = vadd.f32 %v849, %v889
  %891 = vmatmul.f32.gmra.mxu0 %v558
  %v892 = vpop.f32.mrf.mxu0
  %v893 = vadd.f32 %v852, %v892
  %894 = vmatmul.f32.gmra.mxu0 %v560
  %v895 = vpop.f32.mrf.mxu0
  %v896 = vadd.f32 %v855, %v895
  %897 = vmatmul.f32.gmra.mxu0 %v562
  %v898 = vpop.f32.mrf.mxu0
  %v899 = vadd.f32 %v858, %v898
  %900 = vdwg.mxu0
  %901 = vmatpush.msra.mxu0 %v684
  %902 = vmatpush.msra.mxu0 %v676
  %903 = vmatpush.msra.mxu0 %v668
  %904 = vmatpush.msra.mxu0 %v660
  %905 = vmatpush.msra.mxu0 %v652
  %906 = vmatpush.msra.mxu0 %v644
  %907 = vmatpush.msra.mxu0 %v636
  %908 = vmatpush.msra.mxu0 %v628
  %909 = vmatpush.msra.mxu0 %v620
  %910 = vmatpush.msra.mxu0 %v612
  %911 = vmatpush.msra.mxu0 %v604
  %912 = vmatpush.msra.mxu0 %v596
  %913 = vmatpush.msra.mxu0 %v588
  %914 = vmatpush.msra.mxu0 %v580
  %915 = vmatpush.msra.mxu0 %v572
  %916 = vmatpush.msra.mxu0 %v564
  %917 = vmatmul.f32.gmra.mxu0 %v296
  %v918 = vpop.f32.mrf.mxu0
  %v919 = vadd.f32 0.0, %v918
  %920 = vmatmul.f32.gmra.mxu0 %v298
  %v921 = vpop.f32.mrf.mxu0
  %v922 = vadd.f32 0.0, %v921
  %923 = vmatmul.f32.gmra.mxu0 %v300
  %v924 = vpop.f32.mrf.mxu0
  %v925 = vadd.f32 0.0, %v924
  %926 = vmatmul.f32.gmra.mxu0 %v302
  %v927 = vpop.f32.mrf.mxu0
  %v928 = vadd.f32 0.0, %v927
  %929 = vmatmul.f32.gmra.mxu0 %v555
  %v930 = vpop.f32.mrf.mxu0
  %v931 = vadd.f32 0.0, %v930
  %932 = vmatmul.f32.gmra.mxu0 %v557
  %v933 = vpop.f32.mrf.mxu0
  %v934 = vadd.f32 0.0, %v933
  %935 = vmatmul.f32.gmra.mxu0 %v559
  %v936 = vpop.f32.mrf.mxu0
  %v937 = vadd.f32 0.0, %v936
  %938 = vmatmul.f32.gmra.mxu0 %v561
  %v939 = vpop.f32.mrf.mxu0
  %v940 = vadd.f32 0.0, %v939
  %941 = vdwg.mxu0
  %942 = vmatpush.msra.mxu0 %v812
  %943 = vmatpush.msra.mxu0 %v804
  %944 = vmatpush.msra.mxu0 %v796
  %945 = vmatpush.msra.mxu0 %v788
  %946 = vmatpush.msra.mxu0 %v780
  %947 = vmatpush.msra.mxu0 %v772
  %948 = vmatpush.msra.mxu0 %v764
  %949 = vmatpush.msra.mxu0 %v756
  %950 = vmatpush.msra.mxu0 %v748
  %951 = vmatpush.msra.mxu0 %v740
  %952 = vmatpush.msra.mxu0 %v732
  %953 = vmatpush.msra.mxu0 %v724
  %954 = vmatpush.msra.mxu0 %v716
  %955 = vmatpush.msra.mxu0 %v708
  %956 = vmatpush.msra.mxu0 %v700
  %957 = vmatpush.msra.mxu0 %v692
  %958 = vmatmul.f32.gmra.mxu0 %v297
  %v959 = vpop.f32.mrf.mxu0
  %v960 = vadd.f32 %v919, %v959
  %961 = vmatmul.f32.gmra.mxu0 %v299
  %v962 = vpop.f32.mrf.mxu0
  %v963 = vadd.f32 %v922, %v962
  %964 = vmatmul.f32.gmra.mxu0 %v301
  %v965 = vpop.f32.mrf.mxu0
  %v966 = vadd.f32 %v925, %v965
  %967 = vmatmul.f32.gmra.mxu0 %v303
  %v968 = vpop.f32.mrf.mxu0
  %v969 = vadd.f32 %v928, %v968
  %970 = vmatmul.f32.gmra.mxu0 %v556
  %v971 = vpop.f32.mrf.mxu0
  %v972 = vadd.f32 %v931, %v971
  %973 = vmatmul.f32.gmra.mxu0 %v558
  %v974 = vpop.f32.mrf.mxu0
  %v975 = vadd.f32 %v934, %v974
  %976 = vmatmul.f32.gmra.mxu0 %v560
  %v977 = vpop.f32.mrf.mxu0
  %v978 = vadd.f32 %v937, %v977
  %979 = vmatmul.f32.gmra.mxu0 %v562
  %v980 = vpop.f32.mrf.mxu0
  %v981 = vadd.f32 %v940, %v980
  %982 = vdwg.mxu0
  %983 = vmatpush.msra.mxu0 %v685
  %984 = vmatpush.msra.mxu0 %v677
  %985 = vmatpush.msra.mxu0 %v669
  %986 = vmatpush.msra.mxu0 %v661
  %987 = vmatpush.msra.mxu0 %v653
  %988 = vmatpush.msra.mxu0 %v645
  %989 = vmatpush.msra.mxu0 %v637
  %990 = vmatpush.msra.mxu0 %v629
  %991 = vmatpush.msra.mxu0 %v621
  %992 = vmatpush.msra.mxu0 %v613
  %993 = vmatpush.msra.mxu0 %v605
  %994 = vmatpush.msra.mxu0 %v597
  %995 = vmatpush.msra.mxu0 %v589
  %996 = vmatpush.msra.mxu0 %v581
  %997 = vmatpush.msra.mxu0 %v573
  %998 = vmatpush.msra.mxu0 %v565
  %999 = vmatmul.f32.gmra.mxu0 %v296
  %v1000 = vpop.f32.mrf.mxu0
  %v1001 = vadd.f32 0.0, %v1000
  %1002 = vmatmul.f32.gmra.mxu0 %v298
  %v1003 = vpop.f32.mrf.mxu0
  %v1004 = vadd.f32 0.0, %v1003
  %1005 = vmatmul.f32.gmra.mxu0 %v300
  %v1006 = vpop.f32.mrf.mxu0
  %v1007 = vadd.f32 0.0, %v1006
  %1008 = vmatmul.f32.gmra.mxu0 %v302
  %v1009 = vpop.f32.mrf.mxu0
  %v1010 = vadd.f32 0.0, %v1009
  %1011 = vmatmul.f32.gmra.mxu0 %v555
  %v1012 = vpop.f32.mrf.mxu0
  %v1013 = vadd.f32 0.0, %v1012
  %1014 = vmatmul.f32.gmra.mxu0 %v557
  %v1015 = vpop.f32.mrf.mxu0
  %v1016 = vadd.f32 0.0, %v1015
  %1017 = vmatmul.f32.gmra.mxu0 %v559
  %v1018 = vpop.f32.mrf.mxu0
  %v1019 = vadd.f32 0.0, %v1018
  %1020 = vmatmul.f32.gmra.mxu0 %v561
  %v1021 = vpop.f32.mrf.mxu0
  %v1022 = vadd.f32 0.0, %v1021
  %1023 = vdwg.mxu0
  %1024 = vmatpush.msra.mxu0 %v813
  %1025 = vmatpush.msra.mxu0 %v805
  %1026 = vmatpush.msra.mxu0 %v797
  %1027 = vmatpush.msra.mxu0 %v789
  %1028 = vmatpush.msra.mxu0 %v781
  %1029 = vmatpush.msra.mxu0 %v773
  %1030 = vmatpush.msra.mxu0 %v765
  %1031 = vmatpush.msra.mxu0 %v757
  %1032 = vmatpush.msra.mxu0 %v749
  %1033 = vmatpush.msra.mxu0 %v741
  %1034 = vmatpush.msra.mxu0 %v733
  %1035 = vmatpush.msra.mxu0 %v725
  %1036 = vmatpush.msra.mxu0 %v717
  %1037 = vmatpush.msra.mxu0 %v709
  %1038 = vmatpush.msra.mxu0 %v701
  %1039 = vmatpush.msra.mxu0 %v693
  %1040 = vmatmul.f32.gmra.mxu0 %v297
  %v1041 = vpop.f32.mrf.mxu0
  %v1042 = vadd.f32 %v1001, %v1041
  %1043 = vmatmul.f32.gmra.mxu0 %v299
  %v1044 = vpop.f32.mrf.mxu0
  %v1045 = vadd.f32 %v1004, %v1044
  %1046 = vmatmul.f32.gmra.mxu0 %v301
  %v1047 = vpop.f32.mrf.mxu0
  %v1048 = vadd.f32 %v1007, %v1047
  %1049 = vmatmul.f32.gmra.mxu0 %v303
  %v1050 = vpop.f32.mrf.mxu0
  %v1051 = vadd.f32 %v1010, %v1050
  %1052 = vmatmul.f32.gmra.mxu0 %v556
  %v1053 = vpop.f32.mrf.mxu0
  %v1054 = vadd.f32 %v1013, %v1053
  %1055 = vmatmul.f32.gmra.mxu0 %v558
  %v1056 = vpop.f32.mrf.mxu0
  %v1057 = vadd.f32 %v1016, %v1056
  %1058 = vmatmul.f32.gmra.mxu0 %v560
  %v1059 = vpop.f32.mrf.mxu0
  %v1060 = vadd.f32 %v1019, %v1059
  %1061 = vmatmul.f32.gmra.mxu0 %v562
  %v1062 = vpop.f32.mrf.mxu0
  %v1063 = vadd.f32 %v1022, %v1062
  %1064 = vdwg.mxu0
  %1065 = vmatpush.msra.mxu0 %v686
  %1066 = vmatpush.msra.mxu0 %v678
  %1067 = vmatpush.msra.mxu0 %v670
  %1068 = vmatpush.msra.mxu0 %v662
  %1069 = vmatpush.msra.mxu0 %v654
  %1070 = vmatpush.msra.mxu0 %v646
  %1071 = vmatpush.msra.mxu0 %v638
  %1072 = vmatpush.msra.mxu0 %v630
  %1073 = vmatpush.msra.mxu0 %v622
  %1074 = vmatpush.msra.mxu0 %v614
  %1075 = vmatpush.msra.mxu0 %v606
  %1076 = vmatpush.msra.mxu0 %v598
  %1077 = vmatpush.msra.mxu0 %v590
  %1078 = vmatpush.msra.mxu0 %v582
  %1079 = vmatpush.msra.mxu0 %v574
  %1080 = vmatpush.msra.mxu0 %v566
  %1081 = vmatmul.f32.gmra.mxu0 %v296
  %v1082 = vpop.f32.mrf.mxu0
  %v1083 = vadd.f32 0.0, %v1082
  %1084 = vmatmul.f32.gmra.mxu0 %v298
  %v1085 = vpop.f32.mrf.mxu0
  %v1086 = vadd.f32 0.0, %v1085
  %1087 = vmatmul.f32.gmra.mxu0 %v300
  %v1088 = vpop.f32.mrf.mxu0
  %v1089 = vadd.f32 0.0, %v1088
  %1090 = vmatmul.f32.gmra.mxu0 %v302
  %v1091 = vpop.f32.mrf.mxu0
  %v1092 = vadd.f32 0.0, %v1091
  %1093 = vmatmul.f32.gmra.mxu0 %v555
  %v1094 = vpop.f32.mrf.mxu0
  %v1095 = vadd.f32 0.0, %v1094
  %1096 = vmatmul.f32.gmra.mxu0 %v557
  %v1097 = vpop.f32.mrf.mxu0
  %v1098 = vadd.f32 0.0, %v1097
  %1099 = vmatmul.f32.gmra.mxu0 %v559
  %v1100 = vpop.f32.mrf.mxu0
  %v1101 = vadd.f32 0.0, %v1100
  %1102 = vmatmul.f32.gmra.mxu0 %v561
  %v1103 = vpop.f32.mrf.mxu0
  %v1104 = vadd.f32 0.0, %v1103
  %1105 = vdwg.mxu0
  %1106 = vmatpush.msra.mxu0 %v814
  %1107 = vmatpush.msra.mxu0 %v806
  %1108 = vmatpush.msra.mxu0 %v798
  %1109 = vmatpush.msra.mxu0 %v790
  %1110 = vmatpush.msra.mxu0 %v782
  %1111 = vmatpush.msra.mxu0 %v774
  %1112 = vmatpush.msra.mxu0 %v766
  %1113 = vmatpush.msra.mxu0 %v758
  %1114 = vmatpush.msra.mxu0 %v750
  %1115 = vmatpush.msra.mxu0 %v742
  %1116 = vmatpush.msra.mxu0 %v734
  %1117 = vmatpush.msra.mxu0 %v726
  %1118 = vmatpush.msra.mxu0 %v718
  %1119 = vmatpush.msra.mxu0 %v710
  %1120 = vmatpush.msra.mxu0 %v702
  %1121 = vmatpush.msra.mxu0 %v694
  %1122 = vmatmul.f32.gmra.mxu0 %v297
  %v1123 = vpop.f32.mrf.mxu0
  %v1124 = vadd.f32 %v1083, %v1123
  %1125 = vmatmul.f32.gmra.mxu0 %v299
  %v1126 = vpop.f32.mrf.mxu0
  %v1127 = vadd.f32 %v1086, %v1126
  %1128 = vmatmul.f32.gmra.mxu0 %v301
  %v1129 = vpop.f32.mrf.mxu0
  %v1130 = vadd.f32 %v1089, %v1129
  %1131 = vmatmul.f32.gmra.mxu0 %v303
  %v1132 = vpop.f32.mrf.mxu0
  %v1133 = vadd.f32 %v1092, %v1132
  %1134 = vmatmul.f32.gmra.mxu0 %v556
  %v1135 = vpop.f32.mrf.mxu0
  %v1136 = vadd.f32 %v1095, %v1135
  %1137 = vmatmul.f32.gmra.mxu0 %v558
  %v1138 = vpop.f32.mrf.mxu0
  %v1139 = vadd.f32 %v1098, %v1138
  %1140 = vmatmul.f32.gmra.mxu0 %v560
  %v1141 = vpop.f32.mrf.mxu0
  %v1142 = vadd.f32 %v1101, %v1141
  %1143 = vmatmul.f32.gmra.mxu0 %v562
  %v1144 = vpop.f32.mrf.mxu0
  %v1145 = vadd.f32 %v1104, %v1144
  %1146 = vdwg.mxu0
  %1147 = vmatpush.msra.mxu0 %v687
  %1148 = vmatpush.msra.mxu0 %v679
  %1149 = vmatpush.msra.mxu0 %v671
  %1150 = vmatpush.msra.mxu0 %v663
  %1151 = vmatpush.msra.mxu0 %v655
  %1152 = vmatpush.msra.mxu0 %v647
  %1153 = vmatpush.msra.mxu0 %v639
  %1154 = vmatpush.msra.mxu0 %v631
  %1155 = vmatpush.msra.mxu0 %v623
  %1156 = vmatpush.msra.mxu0 %v615
  %1157 = vmatpush.msra.mxu0 %v607
  %1158 = vmatpush.msra.mxu0 %v599
  %1159 = vmatpush.msra.mxu0 %v591
  %1160 = vmatpush.msra.mxu0 %v583
  %1161 = vmatpush.msra.mxu0 %v575
  %1162 = vmatpush.msra.mxu0 %v567
  %1163 = vmatmul.f32.gmra.mxu0 %v296
  %v1164 = vpop.f32.mrf.mxu0
  %v1165 = vadd.f32 0.0, %v1164
  %1166 = vmatmul.f32.gmra.mxu0 %v298
  %v1167 = vpop.f32.mrf.mxu0
  %v1168 = vadd.f32 0.0, %v1167
  %1169 = vmatmul.f32.gmra.mxu0 %v300
  %v1170 = vpop.f32.mrf.mxu0
  %v1171 = vadd.f32 0.0, %v1170
  %1172 = vmatmul.f32.gmra.mxu0 %v302
  %v1173 = vpop.f32.mrf.mxu0
  %v1174 = vadd.f32 0.0, %v1173
  %1175 = vmatmul.f32.gmra.mxu0 %v555
  %v1176 = vpop.f32.mrf.mxu0
  %v1177 = vadd.f32 0.0, %v1176
  %1178 = vmatmul.f32.gmra.mxu0 %v557
  %v1179 = vpop.f32.mrf.mxu0
  %v1180 = vadd.f32 0.0, %v1179
  %1181 = vmatmul.f32.gmra.mxu0 %v559
  %v1182 = vpop.f32.mrf.mxu0
  %v1183 = vadd.f32 0.0, %v1182
  %1184 = vmatmul.f32.gmra.mxu0 %v561
  %v1185 = vpop.f32.mrf.mxu0
  %v1186 = vadd.f32 0.0, %v1185
  %1187 = vdwg.mxu0
  %1188 = vmatpush.msra.mxu0 %v815
  %1189 = vmatpush.msra.mxu0 %v807
  %1190 = vmatpush.msra.mxu0 %v799
  %1191 = vmatpush.msra.mxu0 %v791
  %1192 = vmatpush.msra.mxu0 %v783
  %1193 = vmatpush.msra.mxu0 %v775
  %1194 = vmatpush.msra.mxu0 %v767
  %1195 = vmatpush.msra.mxu0 %v759
  %1196 = vmatpush.msra.mxu0 %v751
  %1197 = vmatpush.msra.mxu0 %v743
  %1198 = vmatpush.msra.mxu0 %v735
  %1199 = vmatpush.msra.mxu0 %v727
  %1200 = vmatpush.msra.mxu0 %v719
  %1201 = vmatpush.msra.mxu0 %v711
  %1202 = vmatpush.msra.mxu0 %v703
  %1203 = vmatpush.msra.mxu0 %v695
  %1204 = vmatmul.f32.gmra.mxu0 %v297
  %v1205 = vpop.f32.mrf.mxu0
  %v1206 = vadd.f32 %v1165, %v1205
  %1207 = vmatmul.f32.gmra.mxu0 %v299
  %v1208 = vpop.f32.mrf.mxu0
  %v1209 = vadd.f32 %v1168, %v1208
  %1210 = vmatmul.f32.gmra.mxu0 %v301
  %v1211 = vpop.f32.mrf.mxu0
  %v1212 = vadd.f32 %v1171, %v1211
  %1213 = vmatmul.f32.gmra.mxu0 %v303
  %v1214 = vpop.f32.mrf.mxu0
  %v1215 = vadd.f32 %v1174, %v1214
  %1216 = vmatmul.f32.gmra.mxu0 %v556
  %v1217 = vpop.f32.mrf.mxu0
  %v1218 = vadd.f32 %v1177, %v1217
  %1219 = vmatmul.f32.gmra.mxu0 %v558
  %v1220 = vpop.f32.mrf.mxu0
  %v1221 = vadd.f32 %v1180, %v1220
  %1222 = vmatmul.f32.gmra.mxu0 %v560
  %v1223 = vpop.f32.mrf.mxu0
  %v1224 = vadd.f32 %v1183, %v1223
  %1225 = vmatmul.f32.gmra.mxu0 %v562
  %v1226 = vpop.f32.mrf.mxu0
  %v1227 = vadd.f32 %v1186, %v1226
  %1228 = vdwg.mxu0
  %1229 = vmatpush.msra.mxu0 %v688
  %1230 = vmatpush.msra.mxu0 %v680
  %1231 = vmatpush.msra.mxu0 %v672
  %1232 = vmatpush.msra.mxu0 %v664
  %1233 = vmatpush.msra.mxu0 %v656
  %1234 = vmatpush.msra.mxu0 %v648
  %1235 = vmatpush.msra.mxu0 %v640
  %1236 = vmatpush.msra.mxu0 %v632
  %1237 = vmatpush.msra.mxu0 %v624
  %1238 = vmatpush.msra.mxu0 %v616
  %1239 = vmatpush.msra.mxu0 %v608
  %1240 = vmatpush.msra.mxu0 %v600
  %1241 = vmatpush.msra.mxu0 %v592
  %1242 = vmatpush.msra.mxu0 %v584
  %1243 = vmatpush.msra.mxu0 %v576
  %1244 = vmatpush.msra.mxu0 %v568
  %1245 = vmatmul.f32.gmra.mxu0 %v296
  %v1246 = vpop.f32.mrf.mxu0
  %v1247 = vadd.f32 0.0, %v1246
  %1248 = vmatmul.f32.gmra.mxu0 %v298
  %v1249 = vpop.f32.mrf.mxu0
  %v1250 = vadd.f32 0.0, %v1249
  %1251 = vmatmul.f32.gmra.mxu0 %v300
  %v1252 = vpop.f32.mrf.mxu0
  %v1253 = vadd.f32 0.0, %v1252
  %1254 = vmatmul.f32.gmra.mxu0 %v302
  %v1255 = vpop.f32.mrf.mxu0
  %v1256 = vadd.f32 0.0, %v1255
  %1257 = vmatmul.f32.gmra.mxu0 %v555
  %v1258 = vpop.f32.mrf.mxu0
  %v1259 = vadd.f32 0.0, %v1258
  %1260 = vmatmul.f32.gmra.mxu0 %v557
  %v1261 = vpop.f32.mrf.mxu0
  %v1262 = vadd.f32 0.0, %v1261
  %1263 = vmatmul.f32.gmra.mxu0 %v559
  %v1264 = vpop.f32.mrf.mxu0
  %v1265 = vadd.f32 0.0, %v1264
  %1266 = vmatmul.f32.gmra.mxu0 %v561
  %v1267 = vpop.f32.mrf.mxu0
  %v1268 = vadd.f32 0.0, %v1267
  %1269 = vdwg.mxu0
  %1270 = vmatpush.msra.mxu0 %v816
  %1271 = vmatpush.msra.mxu0 %v808
  %1272 = vmatpush.msra.mxu0 %v800
  %1273 = vmatpush.msra.mxu0 %v792
  %1274 = vmatpush.msra.mxu0 %v784
  %1275 = vmatpush.msra.mxu0 %v776
  %1276 = vmatpush.msra.mxu0 %v768
  %1277 = vmatpush.msra.mxu0 %v760
  %1278 = vmatpush.msra.mxu0 %v752
  %1279 = vmatpush.msra.mxu0 %v744
  %1280 = vmatpush.msra.mxu0 %v736
  %1281 = vmatpush.msra.mxu0 %v728
  %1282 = vmatpush.msra.mxu0 %v720
  %1283 = vmatpush.msra.mxu0 %v712
  %1284 = vmatpush.msra.mxu0 %v704
  %1285 = vmatpush.msra.mxu0 %v696
  %1286 = vmatmul.f32.gmra.mxu0 %v297
  %v1287 = vpop.f32.mrf.mxu0
  %v1288 = vadd.f32 %v1247, %v1287
  %1289 = vmatmul.f32.gmra.mxu0 %v299
  %v1290 = vpop.f32.mrf.mxu0
  %v1291 = vadd.f32 %v1250, %v1290
  %1292 = vmatmul.f32.gmra.mxu0 %v301
  %v1293 = vpop.f32.mrf.mxu0
  %v1294 = vadd.f32 %v1253, %v1293
  %1295 = vmatmul.f32.gmra.mxu0 %v303
  %v1296 = vpop.f32.mrf.mxu0
  %v1297 = vadd.f32 %v1256, %v1296
  %1298 = vmatmul.f32.gmra.mxu0 %v556
  %v1299 = vpop.f32.mrf.mxu0
  %v1300 = vadd.f32 %v1259, %v1299
  %1301 = vmatmul.f32.gmra.mxu0 %v558
  %v1302 = vpop.f32.mrf.mxu0
  %v1303 = vadd.f32 %v1262, %v1302
  %1304 = vmatmul.f32.gmra.mxu0 %v560
  %v1305 = vpop.f32.mrf.mxu0
  %v1306 = vadd.f32 %v1265, %v1305
  %1307 = vmatmul.f32.gmra.mxu0 %v562
  %v1308 = vpop.f32.mrf.mxu0
  %v1309 = vadd.f32 %v1268, %v1308
  %1310 = vdwg.mxu0
  %1311 = vmatpush.msra.mxu0 %v689
  %1312 = vmatpush.msra.mxu0 %v681
  %1313 = vmatpush.msra.mxu0 %v673
  %1314 = vmatpush.msra.mxu0 %v665
  %1315 = vmatpush.msra.mxu0 %v657
  %1316 = vmatpush.msra.mxu0 %v649
  %1317 = vmatpush.msra.mxu0 %v641
  %1318 = vmatpush.msra.mxu0 %v633
  %1319 = vmatpush.msra.mxu0 %v625
  %1320 = vmatpush.msra.mxu0 %v617
  %1321 = vmatpush.msra.mxu0 %v609
  %1322 = vmatpush.msra.mxu0 %v601
  %1323 = vmatpush.msra.mxu0 %v593
  %1324 = vmatpush.msra.mxu0 %v585
  %1325 = vmatpush.msra.mxu0 %v577
  %1326 = vmatpush.msra.mxu0 %v569
  %1327 = vmatmul.f32.gmra.mxu0 %v296
  %v1328 = vpop.f32.mrf.mxu0
  %v1329 = vadd.f32 0.0, %v1328
  %1330 = vmatmul.f32.gmra.mxu0 %v298
  %v1331 = vpop.f32.mrf.mxu0
  %v1332 = vadd.f32 0.0, %v1331
  %1333 = vmatmul.f32.gmra.mxu0 %v300
  %v1334 = vpop.f32.mrf.mxu0
  %v1335 = vadd.f32 0.0, %v1334
  %1336 = vmatmul.f32.gmra.mxu0 %v302
  %v1337 = vpop.f32.mrf.mxu0
  %v1338 = vadd.f32 0.0, %v1337
  %1339 = vmatmul.f32.gmra.mxu0 %v555
  %v1340 = vpop.f32.mrf.mxu0
  %v1341 = vadd.f32 0.0, %v1340
  %1342 = vmatmul.f32.gmra.mxu0 %v557
  %v1343 = vpop.f32.mrf.mxu0
  %v1344 = vadd.f32 0.0, %v1343
  %1345 = vmatmul.f32.gmra.mxu0 %v559
  %v1346 = vpop.f32.mrf.mxu0
  %v1347 = vadd.f32 0.0, %v1346
  %1348 = vmatmul.f32.gmra.mxu0 %v561
  %v1349 = vpop.f32.mrf.mxu0
  %v1350 = vadd.f32 0.0, %v1349
  %1351 = vdwg.mxu0
  %1352 = vmatpush.msra.mxu0 %v817
  %1353 = vmatpush.msra.mxu0 %v809
  %1354 = vmatpush.msra.mxu0 %v801
  %1355 = vmatpush.msra.mxu0 %v793
  %1356 = vmatpush.msra.mxu0 %v785
  %1357 = vmatpush.msra.mxu0 %v777
  %1358 = vmatpush.msra.mxu0 %v769
  %1359 = vmatpush.msra.mxu0 %v761
  %1360 = vmatpush.msra.mxu0 %v753
  %1361 = vmatpush.msra.mxu0 %v745
  %1362 = vmatpush.msra.mxu0 %v737
  %1363 = vmatpush.msra.mxu0 %v729
  %1364 = vmatpush.msra.mxu0 %v721
  %1365 = vmatpush.msra.mxu0 %v713
  %1366 = vmatpush.msra.mxu0 %v705
  %1367 = vmatpush.msra.mxu0 %v697
  %1368 = vmatmul.f32.gmra.mxu0 %v297
  %v1369 = vpop.f32.mrf.mxu0
  %v1370 = vadd.f32 %v1329, %v1369
  %1371 = vmatmul.f32.gmra.mxu0 %v299
  %v1372 = vpop.f32.mrf.mxu0
  %v1373 = vadd.f32 %v1332, %v1372
  %1374 = vmatmul.f32.gmra.mxu0 %v301
  %v1375 = vpop.f32.mrf.mxu0
  %v1376 = vadd.f32 %v1335, %v1375
  %1377 = vmatmul.f32.gmra.mxu0 %v303
  %v1378 = vpop.f32.mrf.mxu0
  %v1379 = vadd.f32 %v1338, %v1378
  %1380 = vmatmul.f32.gmra.mxu0 %v556
  %v1381 = vpop.f32.mrf.mxu0
  %v1382 = vadd.f32 %v1341, %v1381
  %1383 = vmatmul.f32.gmra.mxu0 %v558
  %v1384 = vpop.f32.mrf.mxu0
  %v1385 = vadd.f32 %v1344, %v1384
  %1386 = vmatmul.f32.gmra.mxu0 %v560
  %v1387 = vpop.f32.mrf.mxu0
  %v1388 = vadd.f32 %v1347, %v1387
  %1389 = vmatmul.f32.gmra.mxu0 %v562
  %v1390 = vpop.f32.mrf.mxu0
  %v1391 = vadd.f32 %v1350, %v1390
  %1392 = vdwg.mxu0
  %1393 = vmatpush.msra.mxu0 %v690
  %1394 = vmatpush.msra.mxu0 %v682
  %1395 = vmatpush.msra.mxu0 %v674
  %1396 = vmatpush.msra.mxu0 %v666
  %1397 = vmatpush.msra.mxu0 %v658
  %1398 = vmatpush.msra.mxu0 %v650
  %1399 = vmatpush.msra.mxu0 %v642
  %1400 = vmatpush.msra.mxu0 %v634
  %1401 = vmatpush.msra.mxu0 %v626
  %1402 = vmatpush.msra.mxu0 %v618
  %1403 = vmatpush.msra.mxu0 %v610
  %1404 = vmatpush.msra.mxu0 %v602
  %1405 = vmatpush.msra.mxu0 %v594
  %1406 = vmatpush.msra.mxu0 %v586
  %1407 = vmatpush.msra.mxu0 %v578
  %1408 = vmatpush.msra.mxu0 %v570
  %1409 = vmatmul.f32.gmra.mxu0 %v296
  %v1410 = vpop.f32.mrf.mxu0
  %v1411 = vadd.f32 0.0, %v1410
  %1412 = vmatmul.f32.gmra.mxu0 %v298
  %v1413 = vpop.f32.mrf.mxu0
  %v1414 = vadd.f32 0.0, %v1413
  %1415 = vmatmul.f32.gmra.mxu0 %v300
  %v1416 = vpop.f32.mrf.mxu0
  %v1417 = vadd.f32 0.0, %v1416
  %1418 = vmatmul.f32.gmra.mxu0 %v302
  %v1419 = vpop.f32.mrf.mxu0
  %v1420 = vadd.f32 0.0, %v1419
  %1421 = vmatmul.f32.gmra.mxu0 %v555
  %v1422 = vpop.f32.mrf.mxu0
  %v1423 = vadd.f32 0.0, %v1422
  %1424 = vmatmul.f32.gmra.mxu0 %v557
  %v1425 = vpop.f32.mrf.mxu0
  %v1426 = vadd.f32 0.0, %v1425
  %1427 = vmatmul.f32.gmra.mxu0 %v559
  %v1428 = vpop.f32.mrf.mxu0
  %v1429 = vadd.f32 0.0, %v1428
  %1430 = vmatmul.f32.gmra.mxu0 %v561
  %v1431 = vpop.f32.mrf.mxu0
  %v1432 = vadd.f32 0.0, %v1431
  %1433 = vdwg.mxu0
  %1434 = vmatpush.msra.mxu0 %v818
  %1435 = vmatpush.msra.mxu0 %v810
  %1436 = vmatpush.msra.mxu0 %v802
  %1437 = vmatpush.msra.mxu0 %v794
  %1438 = vmatpush.msra.mxu0 %v786
  %1439 = vmatpush.msra.mxu0 %v778
  %1440 = vmatpush.msra.mxu0 %v770
  %1441 = vmatpush.msra.mxu0 %v762
  %1442 = vmatpush.msra.mxu0 %v754
  %1443 = vmatpush.msra.mxu0 %v746
  %1444 = vmatpush.msra.mxu0 %v738
  %1445 = vmatpush.msra.mxu0 %v730
  %1446 = vmatpush.msra.mxu0 %v722
  %1447 = vmatpush.msra.mxu0 %v714
  %1448 = vmatpush.msra.mxu0 %v706
  %1449 = vmatpush.msra.mxu0 %v698
  %1450 = vmatmul.f32.gmra.mxu0 %v297
  %v1451 = vpop.f32.mrf.mxu0
  %v1452 = vadd.f32 %v1411, %v1451
  %1453 = vmatmul.f32.gmra.mxu0 %v299
  %v1454 = vpop.f32.mrf.mxu0
  %v1455 = vadd.f32 %v1414, %v1454
  %1456 = vmatmul.f32.gmra.mxu0 %v301
  %v1457 = vpop.f32.mrf.mxu0
  %v1458 = vadd.f32 %v1417, %v1457
  %1459 = vmatmul.f32.gmra.mxu0 %v303
  %v1460 = vpop.f32.mrf.mxu0
  %v1461 = vadd.f32 %v1420, %v1460
  %1462 = vmatmul.f32.gmra.mxu0 %v556
  %v1463 = vpop.f32.mrf.mxu0
  %v1464 = vadd.f32 %v1423, %v1463
  %1465 = vmatmul.f32.gmra.mxu0 %v558
  %v1466 = vpop.f32.mrf.mxu0
  %v1467 = vadd.f32 %v1426, %v1466
  %1468 = vmatmul.f32.gmra.mxu0 %v560
  %v1469 = vpop.f32.mrf.mxu0
  %v1470 = vadd.f32 %v1429, %v1469
  %1471 = vmatmul.f32.gmra.mxu0 %v562
  %v1472 = vpop.f32.mrf.mxu0
  %v1473 = vadd.f32 %v1432, %v1472
  %1474 = vdwg.mxu0
  %1475 = vst [vmem:[%s4] sm:$0xff] %v878
  %1476 = vst [vmem:[%s4 + $0x8] sm:$0xff] %v960
  %1477 = vst [vmem:[%s4 + $0x10] sm:$0xff] %v1042
  %1478 = vst [vmem:[%s4 + $0x18] sm:$0xff] %v1124
  %1479 = vst [vmem:[%s4 + $0x20] sm:$0xff] %v1206
  %1480 = vst [vmem:[%s4 + $0x28] sm:$0xff] %v1288
  %1481 = vst [vmem:[%s4 + $0x30] sm:$0xff] %v1370
  %1482 = vst [vmem:[%s4 + $0x38] sm:$0xff] %v1452
  %1483 = vst [vmem:[%s4 + $0x40] sm:$0xff] %v881
  %1484 = vst [vmem:[%s4 + $0x48] sm:$0xff] %v963
  %1485 = vst [vmem:[%s4 + $0x50] sm:$0xff] %v1045
  %1486 = vst [vmem:[%s4 + $0x58] sm:$0xff] %v1127
  %1487 = vst [vmem:[%s4 + $0x60] sm:$0xff] %v1209
  %1488 = vst [vmem:[%s4 + $0x68] sm:$0xff] %v1291
  %1489 = vst [vmem:[%s4 + $0x70] sm:$0xff] %v1373
  %1490 = vst [vmem:[%s4 + $0x78] sm:$0xff] %v1455
  %1491 = vst [vmem:[%s4 + $0x80] sm:$0xff] %v884
  %1492 = vst [vmem:[%s4 + $0x88] sm:$0xff] %v966
  %1493 = vst [vmem:[%s4 + $0x90] sm:$0xff] %v1048
  %1494 = vst [vmem:[%s4 + $0x98] sm:$0xff] %v1130
  %1495 = vst [vmem:[%s4 + $0xa0] sm:$0xff] %v1212
  %1496 = vst [vmem:[%s4 + $0xa8] sm:$0xff] %v1294
  %1497 = vst [vmem:[%s4 + $0xb0] sm:$0xff] %v1376
  %1498 = vst [vmem:[%s4 + $0xb8] sm:$0xff] %v1458
  %1499 = vst [vmem:[%s4 + $0xc0] sm:$0xff] %v887
  %1500 = vst [vmem:[%s4 + $0xc8] sm:$0xff] %v969
  %1501 = vst [vmem:[%s4 + $0xd0] sm:$0xff] %v1051
  %1502 = vst [vmem:[%s4 + $0xd8] sm:$0xff] %v1133
  %1503 = vst [vmem:[%s4 + $0xe0] sm:$0xff] %v1215
  %1504 = vst [vmem:[%s4 + $0xe8] sm:$0xff] %v1297
  %1505 = vst [vmem:[%s4 + $0xf0] sm:$0xff] %v1379
  %1506 = vst [vmem:[%s4 + $0xf8] sm:$0xff] %v1461
  %1507 = vst [vmem:[%s4 + $0x100] sm:$0xff] %v890
  %1508 = vst [vmem:[%s4 + $0x108] sm:$0xff] %v972
  %1509 = vst [vmem:[%s4 + $0x110] sm:$0xff] %v1054
  %1510 = vst [vmem:[%s4 + $0x118] sm:$0xff] %v1136
  %1511 = vst [vmem:[%s4 + $0x120] sm:$0xff] %v1218
  %1512 = vst [vmem:[%s4 + $0x128] sm:$0xff] %v1300
  %1513 = vst [vmem:[%s4 + $0x130] sm:$0xff] %v1382
  %1514 = vst [vmem:[%s4 + $0x138] sm:$0xff] %v1464
  %1515 = vst [vmem:[%s4 + $0x140] sm:$0xff] %v893
  %1516 = vst [vmem:[%s4 + $0x148] sm:$0xff] %v975
  %1517 = vst [vmem:[%s4 + $0x150] sm:$0xff] %v1057
  %1518 = vst [vmem:[%s4 + $0x158] sm:$0xff] %v1139
  %1519 = vst [vmem:[%s4 + $0x160] sm:$0xff] %v1221
  %1520 = vst [vmem:[%s4 + $0x168] sm:$0xff] %v1303
  %1521 = vst [vmem:[%s4 + $0x170] sm:$0xff] %v1385
  %1522 = vst [vmem:[%s4 + $0x178] sm:$0xff] %v1467
  %1523 = vst [vmem:[%s4 + $0x180] sm:$0xff] %v896
  %1524 = vst [vmem:[%s4 + $0x188] sm:$0xff] %v978
  %1525 = vst [vmem:[%s4 + $0x190] sm:$0xff] %v1060
  %1526 = vst [vmem:[%s4 + $0x198] sm:$0xff] %v1142
  %1527 = vst [vmem:[%s4 + $0x1a0] sm:$0xff] %v1224
  %1528 = vst [vmem:[%s4 + $0x1a8] sm:$0xff] %v1306
  %1529 = vst [vmem:[%s4 + $0x1b0] sm:$0xff] %v1388
  %1530 = vst [vmem:[%s4 + $0x1b8] sm:$0xff] %v1470
  %1531 = vst [vmem:[%s4 + $0x1c0] sm:$0xff] %v899
  %1532 = vst [vmem:[%s4 + $0x1c8] sm:$0xff] %v981
  %1533 = vst [vmem:[%s4 + $0x1d0] sm:$0xff] %v1063
  %1534 = vst [vmem:[%s4 + $0x1d8] sm:$0xff] %v1145
  %1535 = vst [vmem:[%s4 + $0x1e0] sm:$0xff] %v1227
  %1536 = vst [vmem:[%s4 + $0x1e8] sm:$0xff] %v1309
  %1537 = vst [vmem:[%s4 + $0x1f0] sm:$0xff] %v1391
  %1538 = vst [vmem:[%s4 + $0x1f8] sm:$0xff] %v1473
  // Predicated region
  $region18: #{upsample_block.1} parent=0 // pred_check
    _
  $region19: #{upsample_block.1} parent=0 // pred_check_branch
    %1540 = sbr.rel (0) target = $region21
  $region20: #{upsample_block.1} parent=0 // pred_region
    _
  $region21: #{upsample_block.1} parent=0 // pred_fallthru
    _
  // Predicated region
  $region22: #{upsample_block.1} parent=0 // pred_check
    _
  $region23: #{upsample_block.1} parent=0 // pred_check_branch
    %1542 = sbr.rel (0) target = $region25
  $region24: #{upsample_block.1} parent=0 // pred_region
    _
  $region25: #{upsample_block.1} parent=0 // pred_fallthru
    _

</llo_original>
